<compile_context>
chip_gen: v6e
topology: v6e:2x2x1
jax: 0.10.0
libtpu: 0.0.40
codegen_flags: <defaults>
</compile_context>

<pallas_src>
import functools
import math

import jax
import jax.numpy as jnp
from jax.experimental import pallas as pl
from jax.experimental.pallas import tpu as pltpu


# Row indices into the packed bias / LayerNorm-parameter table.
_BQKV1, _BO1, _LN1G, _LN1B = 0, 1, 2, 3
_BQ2, _BKV2, _BO2, _LN2G, _LN2B = 4, 5, 6, 7, 8
_B1, _B2, _LN3G, _LN3B = 9, 10, 11, 12
_N_VEC = 13


# ----------------------------------------------------------------------------
# Fused decoder-layer kernel (one grid step == one batch element)
# ----------------------------------------------------------------------------

def decoder_layer_kernel(
    # per-batch activation / mask blocks
    x_ref, enc_ref, tgt_mask_ref, src_mask_ref,
    # weight matrices (bf16, shared across grid steps)
    wqkv1_ref, wo1_ref, wq2_ref, wkv2_ref, wo2_ref, w1_ref, w2_ref,
    # packed f32 bias / LayerNorm vectors (13, vec_w)
    vec_ref,
    # output
    o_ref,
    *, num_heads, d_k, d_ff, scale, eps, mxu_dtype):

    f32 = jnp.float32
    d_model = num_heads * d_k

    def vec(row, width):
        # static prefix slice of one packed row -> (1, width) f32
        return vec_ref[row:row + 1, 0:width]

    def layer_norm(z, g, b):
        mu = jnp.mean(z, axis=-1, keepdims=True)
        var = jnp.mean((z - mu) ** 2, axis=-1, keepdims=True)
        return (z - mu) * jax.lax.rsqrt(var + eps) * g + b

    def split_heads(z2d, base):
        # z2d: (S, n*d_model) f32 -> (H, S, d_k) in the MXU dtype
        return jnp.stack(
            [z2d[:, base + h * d_k: base + (h + 1) * d_k] for h in range(num_heads)],
            axis=0).astype(mxu_dtype)

    def mha(q2d, kv2d, q_base, k_base, v_base, mask, wo_ref, bo):
        qh = split_heads(q2d, q_base)      # (H, Sq, d_k)
        kh = split_heads(kv2d, k_base)     # (H, Sk, d_k)
        vh = split_heads(kv2d, v_base)     # (H, Sk, d_k)
        # one head-batched score matmul (transposed-RHS dot, no explicit K^T)
        s = jnp.einsum('hqd,hkd->hqk', qh, kh,
                       preferred_element_type=f32) * scale       # (H, Sq, Sk) f32
        s = s + mask                                             # (1, Sk) broadcast
        s = s - jnp.max(s, axis=-1, keepdims=True)
        p = jnp.exp(s)
        p = p * pl.reciprocal(jnp.sum(p, axis=-1, keepdims=True), approx=True)
        # one head-batched context matmul
        oh = jnp.einsum('hqk,hkd->hqd', p.astype(mxu_dtype), vh,
                        preferred_element_type=f32)              # (H, Sq, d_k) f32
        # combine heads along lanes -> ONE (Sq, D) x (D, D) output projection
        o2d = jnp.concatenate([oh[h] for h in range(num_heads)], axis=-1)
        return jnp.dot(o2d.astype(mxu_dtype), wo_ref[...],
                       preferred_element_type=f32) + bo

    x2 = x_ref[...]      # (S, D)  f32
    e2 = enc_ref[...]    # (Se, D) f32

    # ---- self-attention sub-block (fused QKV projection) ----
    qkv1 = jnp.dot(x2.astype(mxu_dtype), wqkv1_ref[...],
                   preferred_element_type=f32) + vec(_BQKV1, 3 * d_model)
    a1 = mha(qkv1, qkv1, 0, d_model, 2 * d_model,
             tgt_mask_ref[...], wo1_ref, vec(_BO1, d_model))
    h1 = layer_norm(x2 + a1, vec(_LN1G, d_model), vec(_LN1B, d_model))

    # ---- encoder-decoder attention sub-block (fused KV projection) ----
    q2 = jnp.dot(h1.astype(mxu_dtype), wq2_ref[...],
                 preferred_element_type=f32) + vec(_BQ2, d_model)
    kv2 = jnp.dot(e2.astype(mxu_dtype), wkv2_ref[...],
                  preferred_element_type=f32) + vec(_BKV2, 2 * d_model)
    a2 = mha(q2, kv2, 0, 0, d_model,
             src_mask_ref[...], wo2_ref, vec(_BO2, d_model))
    h2 = layer_norm(h1 + a2, vec(_LN2G, d_model), vec(_LN2B, d_model))

    # ---- position-wise feed-forward sub-block ----
    f = jnp.dot(h2.astype(mxu_dtype), w1_ref[...],
                preferred_element_type=f32) + vec(_B1, d_ff)
    f = jnp.maximum(f, 0.0)
    f = jnp.dot(f.astype(mxu_dtype), w2_ref[...],
                preferred_element_type=f32) + vec(_B2, d_model)
    o_ref[...] = layer_norm(h2 + f, vec(_LN3G, d_model), vec(_LN3B, d_model))


# ----------------------------------------------------------------------------
# Wrapper: weight fusion / packing + single pallas_call
# ----------------------------------------------------------------------------

def decoder_layer_forward(params, x, enc_output, src_mask, tgt_mask, num_heads,
                          mxu_dtype=jnp.bfloat16):
    B, S, D = x.shape
    Se = enc_output.shape[1]
    d_k = D // num_heads
    d_ff = params['w1'].shape[1]
    scale = 1.0 / math.sqrt(d_k)

    p1, p2 = params['attn1'], params['attn2']

    # MXU operands in bf16 (accumulation stays f32 in-kernel).
    wqkv1 = jnp.concatenate([p1['wq'], p1['wk'], p1['wv']], axis=1).astype(mxu_dtype)
    wkv2 = jnp.concatenate([p2['wk'], p2['wv']], axis=1).astype(mxu_dtype)
    wo1 = p1['wo'].astype(mxu_dtype)
    wq2 = p2['wq'].astype(mxu_dtype)
    wo2 = p2['wo'].astype(mxu_dtype)
    w1 = params['w1'].astype(mxu_dtype)
    w2 = params['w2'].astype(mxu_dtype)

    # Pack all small (1, *) vectors into a single f32 table (fewer inputs/DMAs).
    vec_w = max(3 * D, 2 * D, d_ff)

    def row(v):
        v = v.reshape(-1).astype(jnp.float32)
        return jnp.pad(v, (0, vec_w - v.shape[0]))

    vecs = jnp.stack([
        row(jnp.concatenate([p1['bq'], p1['bk'], p1['bv']], axis=1)),   # bqkv1
        row(p1['bo']), row(params['ln1_g']), row(params['ln1_b']),
        row(p2['bq']),
        row(jnp.concatenate([p2['bk'], p2['bv']], axis=1)),             # bkv2
        row(p2['bo']), row(params['ln2_g']), row(params['ln2_b']),
        row(params['b1']), row(params['b2']),
        row(params['ln3_g']), row(params['ln3_b']),
    ], axis=0)                                                           # (13, vec_w)

    # Additive masks in compact (B, 1, S_k) form; broadcast inside the kernel.
    tgt_mask3 = tgt_mask[:, None, :].astype(jnp.float32)
    src_mask3 = src_mask[:, None, :].astype(jnp.float32)

    def _full(shape):     # same (weight) block for every grid step
        nd = len(shape)
        return pl.BlockSpec(shape, lambda b, _nd=nd: (0,) * _nd)

    in_specs = [
        pl.BlockSpec((None, S, D), lambda b: (b, 0, 0)),     # x
        pl.BlockSpec((None, Se, D), lambda b: (b, 0, 0)),    # enc_output
        pl.BlockSpec((None, 1, S), lambda b: (b, 0, 0)),     # tgt_mask
        pl.BlockSpec((None, 1, Se), lambda b: (b, 0, 0)),    # src_mask
        _full((D, 3 * D)),                                   # wqkv1
        _full((D, D)),                                       # wo1
        _full((D, D)),                                       # wq2
        _full((D, 2 * D)),                                   # wkv2
        _full((D, D)),                                       # wo2
        _full((D, d_ff)),                                    # w1
        _full((d_ff, D)),                                    # w2
        _full((_N_VEC, vec_w)),                              # packed bias/LN table
    ]

    kern = functools.partial(decoder_layer_kernel, num_heads=num_heads, d_k=d_k,
                             d_ff=d_ff, scale=scale, eps=1e-5, mxu_dtype=mxu_dtype)

    return pl.pallas_call(
        kern,
        out_shape=jax.ShapeDtypeStruct((B, S, D), jnp.float32),
        grid=(B,),
        in_specs=in_specs,
        out_specs=pl.BlockSpec((None, S, D), lambda b: (b, 0, 0)),
        compiler_params=pltpu.CompilerParams(
            dimension_semantics=("parallel",),     # shard batch over TCs (v7x)
            vmem_limit_bytes=32 * 1024 * 1024),
    )(x, enc_output, tgt_mask3, src_mask3,
      wqkv1, wo1, wq2, wkv2, wo2, w1, w2, vecs)


# ----------------------------------------------------------------------------
# Pure-JAX reference (mxu_dtype lets us build both a matched-precision and a
# full-f32 reference for correctness checks)
# ----------------------------------------------------------------------------

def _mm(a, b, mxu_dtype):
    return jnp.dot(a.astype(mxu_dtype), b.astype(mxu_dtype),
                   preferred_element_type=jnp.float32)


def _ref_mha(p, q_in, k_in, v_in, mask, num_heads, mxu_dtype):
    B, Sq, D = q_in.shape
    Sk = k_in.shape[1]
    dk = D // num_heads
    scale = 1.0 / math.sqrt(dk)
    Q = (_mm(q_in, p['wq'], mxu_dtype) + p['bq']).reshape(B, Sq, num_heads, dk).transpose(0, 2, 1, 3)
    K = (_mm(k_in, p['wk'], mxu_dtype) + p['bk']).reshape(B, Sk, num_heads, dk).transpose(0, 2, 1, 3)
    V = (_mm(v_in, p['wv'], mxu_dtype) + p['bv']).reshape(B, Sk, num_heads, dk).transpose(0, 2, 1, 3)
    s = jnp.einsum('bhqd,bhkd->bhqk', Q.astype(mxu_dtype), K.astype(mxu_dtype),
                   preferred_element_type=jnp.float32) * scale
    s = s + mask[:, None, None, :]
    probs = jax.nn.softmax(s, axis=-1)
    out = jnp.einsum('bhqk,bhkd->bhqd', probs.astype(mxu_dtype), V.astype(mxu_dtype),
                     preferred_element_type=jnp.float32)
    out = out.transpose(0, 2, 1, 3).reshape(B, Sq, D)
    return _mm(out, p['wo'], mxu_dtype) + p['bo']


def _ref_ln(z, g, b, eps=1e-5):
    mu = jnp.mean(z, axis=-1, keepdims=True)
    var = jnp.mean((z - mu) ** 2, axis=-1, keepdims=True)
    return (z - mu) * jax.lax.rsqrt(var + eps) * g + b


def decoder_layer_ref(params, x, enc_output, src_mask, tgt_mask, num_heads,
                      mxu_dtype=jnp.float32):
    a1 = _ref_mha(params['attn1'], x, x, x, tgt_mask, num_heads, mxu_dtype)
    x = _ref_ln(x + a1, params['ln1_g'], params['ln1_b'])
    a2 = _ref_mha(params['attn2'], x, enc_output, enc_output, src_mask,
                  num_heads, mxu_dtype)
    x = _ref_ln(x + a2, params['ln2_g'], params['ln2_b'])
    f = jnp.maximum(_mm(x, params['w1'], mxu_dtype) + params['b1'], 0.0)
    f = _mm(f, params['w2'], mxu_dtype) + params['b2']
    x = _ref_ln(x + f, params['ln3_g'], params['ln3_b'])
    return x


# ----------------------------------------------------------------------------
# Deterministic parameter init (PyTorch-style uniform(-1/sqrt(fan_in), ...))
# ----------------------------------------------------------------------------

def _init_linear(key, fan_in, fan_out):
    k1, k2 = jax.random.split(key)
    bound = 1.0 / math.sqrt(fan_in)
    w = jax.random.uniform(k1, (fan_in, fan_out), jnp.float32, -bound, bound)
    b = jax.random.uniform(k2, (1, fan_out), jnp.float32, -bound, bound)
    return w, b


def init_decoder_params(key, d_model, d_ff):
    keys = jax.random.split(key, 10)

    def mha_params(ks):
        wq, bq = _init_linear(ks[0], d_model, d_model)
        wk, bk = _init_linear(ks[1], d_model, d_model)
        wv, bv = _init_linear(ks[2], d_model, d_model)
        wo, bo = _init_linear(ks[3], d_model, d_model)
        return dict(wq=wq, bq=bq, wk=wk, bk=bk, wv=wv, bv=bv, wo=wo, bo=bo)

    params = {
        'attn1': mha_params(keys[0:4]),
        'attn2': mha_params(keys[4:8]),
        'ln1_g': jnp.ones((1, d_model), jnp.float32),
        'ln1_b': jnp.zeros((1, d_model), jnp.float32),
        'ln2_g': jnp.ones((1, d_model), jnp.float32),
        'ln2_b': jnp.zeros((1, d_model), jnp.float32),
        'ln3_g': jnp.ones((1, d_model), jnp.float32),
        'ln3_b': jnp.zeros((1, d_model), jnp.float32),
    }
    w1, b1 = _init_linear(keys[8], d_model, d_ff)
    w2, b2 = _init_linear(keys[9], d_ff, d_model)
    params.update(w1=w1, b1=b1, w2=w2, b2=b2)
    return params


# ----------------------------------------------------------------------------
# Main
# ----------------------------------------------------------------------------

if __name__ == "__main__":
    # Lane-dense toy dims: D and d_ff are multiples of 128 (review item 2).
    B, S, S_ENC = 2, 8, 8
    D_MODEL, NUM_HEADS, D_FF = 128, 4, 256

    root = jax.random.PRNGKey(0)
    k_param, k_x, k_enc = jax.random.split(root, 3)

    params = init_decoder_params(k_param, D_MODEL, D_FF)
    x = jax.random.normal(k_x, (B, S, D_MODEL), jnp.float32)
    enc_output = jax.random.normal(k_enc, (B, S_ENC, D_MODEL), jnp.float32)

    # Additive masks, (batch, key_seq): 0 = keep, -1e9 = mask out
    tgt_mask = jnp.zeros((B, S), jnp.float32)
    src_mask = jnp.zeros((B, S_ENC), jnp.float32).at[0, -1].set(-1e9)

    fwd = jax.jit(functools.partial(decoder_layer_forward, num_heads=NUM_HEADS))
    out = jax.block_until_ready(fwd(params, x, enc_output, src_mask, tgt_mask))
    assert out.shape == (B, S, D_MODEL)

    # Matched-precision reference (same bf16 MXU operands, f32 accumulation):
    # tight check of the kernel's math / head batching / masking / LN.
    ref_bf16 = decoder_layer_ref(params, x, enc_output, src_mask, tgt_mask,
                                 NUM_HEADS, mxu_dtype=jnp.bfloat16)
    # Full-f32 reference: loose sanity bound on the bf16-operand error.
    ref_f32 = decoder_layer_ref(params, x, enc_output, src_mask, tgt_mask,
                                NUM_HEADS, mxu_dtype=jnp.float32)

    err_matched = float(jnp.max(jnp.abs(out - ref_bf16)))
    err_f32 = float(jnp.max(jnp.abs(out - ref_f32)))
    assert jnp.allclose(out, ref_bf16, atol=5e-3, rtol=5e-3), \
        f"matched-precision max abs err {err_matched}"
    assert err_f32 < 0.15, f"f32-reference max abs err {err_f32}"

    print("KERNEL_OK")
</pallas_src>

<mosaic_0001>
module attributes {stable_mosaic.version = 11 : i64} {
  func.func @decoder_layer_kernel(%arg0: i32, %arg1: memref<1x8x128xf32, #tpu.memory_space<vmem>>, %arg2: memref<1x8x128xf32, #tpu.memory_space<vmem>>, %arg3: memref<1x1x8xf32, #tpu.memory_space<vmem>>, %arg4: memref<1x1x8xf32, #tpu.memory_space<vmem>>, %arg5: memref<128x384xbf16, #tpu.memory_space<vmem>>, %arg6: memref<128x128xbf16, #tpu.memory_space<vmem>>, %arg7: memref<128x128xbf16, #tpu.memory_space<vmem>>, %arg8: memref<128x256xbf16, #tpu.memory_space<vmem>>, %arg9: memref<128x128xbf16, #tpu.memory_space<vmem>>, %arg10: memref<128x256xbf16, #tpu.memory_space<vmem>>, %arg11: memref<256x128xbf16, #tpu.memory_space<vmem>>, %arg12: memref<13x384xf32, #tpu.memory_space<vmem>>, %arg13: memref<1x8x128xf32, #tpu.memory_space<vmem>>) attributes {dimension_semantics = [#tpu.dimension_semantics<parallel>], iteration_bounds = array<i64: 2>, scalar_prefetch = 0 : i64, scratch_operands = 0 : i64, tpu.core_type = #tpu.core_type<tc>, window_params = [{transform_indices = @transform_0, window_bounds = array<i64: 1, 8, 128>}, {transform_indices = @transform_1, window_bounds = array<i64: 1, 8, 128>}, {transform_indices = @transform_2, window_bounds = array<i64: 1, 1, 8>}, {transform_indices = @transform_3, window_bounds = array<i64: 1, 1, 8>}, {pipeline_mode = #tpu.pipeline_mode<synchronous>, transform_indices = @transform_4, window_bounds = array<i64: 128, 384>}, {pipeline_mode = #tpu.pipeline_mode<synchronous>, transform_indices = @transform_5, window_bounds = array<i64: 128, 128>}, {pipeline_mode = #tpu.pipeline_mode<synchronous>, transform_indices = @transform_6, window_bounds = array<i64: 128, 128>}, {pipeline_mode = #tpu.pipeline_mode<synchronous>, transform_indices = @transform_7, window_bounds = array<i64: 128, 256>}, {pipeline_mode = #tpu.pipeline_mode<synchronous>, transform_indices = @transform_8, window_bounds = array<i64: 128, 128>}, {pipeline_mode = #tpu.pipeline_mode<synchronous>, transform_indices = @transform_9, window_bounds = array<i64: 128, 256>}, {pipeline_mode = #tpu.pipeline_mode<synchronous>, transform_indices = @transform_10, window_bounds = array<i64: 256, 128>}, {pipeline_mode = #tpu.pipeline_mode<synchronous>, transform_indices = @transform_11, window_bounds = array<i64: 13, 384>}, {transform_indices = @transform_12, window_bounds = array<i64: 1, 8, 128>}]} {
    %c0 = arith.constant 0 : index
    %c0_0 = arith.constant 0 : index
    %c0_1 = arith.constant 0 : index
    %0 = vector.load %arg1[%c0, %c0_0, %c0_1] : memref<1x8x128xf32, #tpu.memory_space<vmem>>, vector<1x8x128xf32>
    %1 = vector.shape_cast %0 : vector<1x8x128xf32> to vector<8x128xf32>
    %c0_2 = arith.constant 0 : index
    %c0_3 = arith.constant 0 : index
    %c0_4 = arith.constant 0 : index
    %2 = vector.load %arg2[%c0_2, %c0_3, %c0_4] : memref<1x8x128xf32, #tpu.memory_space<vmem>>, vector<1x8x128xf32>
    %3 = vector.shape_cast %2 : vector<1x8x128xf32> to vector<8x128xf32>
    %4 = arith.truncf %1 : vector<8x128xf32> to vector<8x128xbf16>
    %c0_5 = arith.constant 0 : index
    %c0_6 = arith.constant 0 : index
    %5 = vector.load %arg5[%c0_5, %c0_6] : memref<128x384xbf16, #tpu.memory_space<vmem>>, vector<128x384xbf16>
    %cst = arith.constant dense<0.000000e+00> : vector<8x384xf32>
    %6 = tpu.matmul %4, %5, %cst {dimension_numbers = #tpu.dot_dimension_numbers<[1], [0], [0], [1], [0, 0, 1, 1], [], []>} : vector<8x128xbf16>, vector<128x384xbf16>, vector<8x384xf32> -> vector<8x384xf32>
    %c0_7 = arith.constant 0 : index
    %c0_8 = arith.constant 0 : index
    %7 = vector.load %arg12[%c0_7, %c0_8] : memref<13x384xf32, #tpu.memory_space<vmem>>, vector<1x384xf32>
    %8 = vector.broadcast %7 : vector<1x384xf32> to vector<8x384xf32>
    %9 = arith.addf %6, %8 : vector<8x384xf32>
    %c0_9 = arith.constant 0 : index
    %c0_10 = arith.constant 0 : index
    %c0_11 = arith.constant 0 : index
    %10 = vector.load %arg3[%c0_9, %c0_10, %c0_11] : memref<1x1x8xf32, #tpu.memory_space<vmem>>, vector<1x1x8xf32>
    %11 = vector.shape_cast %10 : vector<1x1x8xf32> to vector<1x8xf32>
    %c1 = arith.constant 1 : index
    %c0_12 = arith.constant 0 : index
    %12 = vector.load %arg12[%c1, %c0_12] : memref<13x384xf32, #tpu.memory_space<vmem>>, vector<1x128xf32>
    %13 = vector.extract_strided_slice %9 {offsets = [0, 0], sizes = [8, 32], strides = [1, 1]} : vector<8x384xf32> to vector<8x32xf32>
    %14 = vector.extract_strided_slice %9 {offsets = [0, 32], sizes = [8, 32], strides = [1, 1]} : vector<8x384xf32> to vector<8x32xf32>
    %15 = vector.extract_strided_slice %9 {offsets = [0, 64], sizes = [8, 32], strides = [1, 1]} : vector<8x384xf32> to vector<8x32xf32>
    %16 = vector.extract_strided_slice %9 {offsets = [0, 96], sizes = [8, 32], strides = [1, 1]} : vector<8x384xf32> to vector<8x32xf32>
    %17 = vector.shape_cast %13 : vector<8x32xf32> to vector<1x8x32xf32>
    %18 = vector.shape_cast %14 : vector<8x32xf32> to vector<1x8x32xf32>
    %19 = vector.shape_cast %15 : vector<8x32xf32> to vector<1x8x32xf32>
    %20 = vector.shape_cast %16 : vector<8x32xf32> to vector<1x8x32xf32>
    %21 = tpu.concatenate %17, %18, %19, %20 in 0 : vector<1x8x32xf32>, vector<1x8x32xf32>, vector<1x8x32xf32>, vector<1x8x32xf32> -> vector<4x8x32xf32>
    %22 = arith.truncf %21 : vector<4x8x32xf32> to vector<4x8x32xbf16>
    %23 = vector.extract_strided_slice %9 {offsets = [0, 128], sizes = [8, 32], strides = [1, 1]} : vector<8x384xf32> to vector<8x32xf32>
    %24 = vector.extract_strided_slice %9 {offsets = [0, 160], sizes = [8, 32], strides = [1, 1]} : vector<8x384xf32> to vector<8x32xf32>
    %25 = vector.extract_strided_slice %9 {offsets = [0, 192], sizes = [8, 32], strides = [1, 1]} : vector<8x384xf32> to vector<8x32xf32>
    %26 = vector.extract_strided_slice %9 {offsets = [0, 224], sizes = [8, 32], strides = [1, 1]} : vector<8x384xf32> to vector<8x32xf32>
    %27 = vector.shape_cast %23 : vector<8x32xf32> to vector<1x8x32xf32>
    %28 = vector.shape_cast %24 : vector<8x32xf32> to vector<1x8x32xf32>
    %29 = vector.shape_cast %25 : vector<8x32xf32> to vector<1x8x32xf32>
    %30 = vector.shape_cast %26 : vector<8x32xf32> to vector<1x8x32xf32>
    %31 = tpu.concatenate %27, %28, %29, %30 in 0 : vector<1x8x32xf32>, vector<1x8x32xf32>, vector<1x8x32xf32>, vector<1x8x32xf32> -> vector<4x8x32xf32>
    %32 = arith.truncf %31 : vector<4x8x32xf32> to vector<4x8x32xbf16>
    %33 = vector.extract_strided_slice %9 {offsets = [0, 256], sizes = [8, 32], strides = [1, 1]} : vector<8x384xf32> to vector<8x32xf32>
    %34 = vector.extract_strided_slice %9 {offsets = [0, 288], sizes = [8, 32], strides = [1, 1]} : vector<8x384xf32> to vector<8x32xf32>
    %35 = vector.extract_strided_slice %9 {offsets = [0, 320], sizes = [8, 32], strides = [1, 1]} : vector<8x384xf32> to vector<8x32xf32>
    %36 = vector.extract_strided_slice %9 {offsets = [0, 352], sizes = [8, 32], strides = [1, 1]} : vector<8x384xf32> to vector<8x32xf32>
    %37 = vector.shape_cast %33 : vector<8x32xf32> to vector<1x8x32xf32>
    %38 = vector.shape_cast %34 : vector<8x32xf32> to vector<1x8x32xf32>
    %39 = vector.shape_cast %35 : vector<8x32xf32> to vector<1x8x32xf32>
    %40 = vector.shape_cast %36 : vector<8x32xf32> to vector<1x8x32xf32>
    %41 = tpu.concatenate %37, %38, %39, %40 in 0 : vector<1x8x32xf32>, vector<1x8x32xf32>, vector<1x8x32xf32>, vector<1x8x32xf32> -> vector<4x8x32xf32>
    %42 = arith.truncf %41 : vector<4x8x32xf32> to vector<4x8x32xbf16>
    "tpu.trace_start"() <{level = 10 : i32, message = "hqd,hkd->hqk"}> : () -> ()
    %cst_13 = arith.constant dense<0.000000e+00> : vector<4x8x8xf32>
    %43 = tpu.matmul %22, %32, %cst_13 {dimension_numbers = #tpu.dot_dimension_numbers<[2], [2], [1], [1], [0, 0, 0, 1, 1, 1], [0], [0]>} : vector<4x8x32xbf16>, vector<4x8x32xbf16>, vector<4x8x8xf32> -> vector<4x8x8xf32>
    "tpu.trace_stop"() : () -> ()
    %cst_14 = arith.constant 0.176776692 : f32
    %44 = vector.broadcast %cst_14 : f32 to vector<4x8x8xf32>
    %45 = arith.mulf %43, %44 : vector<4x8x8xf32>
    %46 = vector.shape_cast %11 : vector<1x8xf32> to vector<1x1x8xf32>
    %47 = vector.broadcast %46 : vector<1x1x8xf32> to vector<4x8x8xf32>
    %48 = arith.addf %45, %47 : vector<4x8x8xf32>
    %cst_15 = arith.constant dense<0xFF800000> : vector<4x8xf32>
    %49 = vector.multi_reduction <maximumf>, %48, %cst_15 [2] : vector<4x8x8xf32> to vector<4x8xf32>
    %50 = vector.shape_cast %49 : vector<4x8xf32> to vector<4x8x1xf32>
    %51 = vector.broadcast %50 : vector<4x8x1xf32> to vector<4x8x8xf32>
    %52 = arith.subf %48, %51 : vector<4x8x8xf32>
    %53 = math.exp %52 : vector<4x8x8xf32>
    %cst_16 = arith.constant dense<0.000000e+00> : vector<4x8xf32>
    %54 = vector.multi_reduction <add>, %53, %cst_16 [2] : vector<4x8x8xf32> to vector<4x8xf32>
    %55 = vector.shape_cast %54 : vector<4x8xf32> to vector<4x8x1xf32>
    %56 = tpu.reciprocal %55 {approx = true} : vector<4x8x1xf32> -> vector<4x8x1xf32>
    %57 = vector.broadcast %56 : vector<4x8x1xf32> to vector<4x8x8xf32>
    %58 = arith.mulf %53, %57 : vector<4x8x8xf32>
    %59 = arith.truncf %58 : vector<4x8x8xf32> to vector<4x8x8xbf16>
    "tpu.trace_start"() <{level = 10 : i32, message = "hqk,hkd->hqd"}> : () -> ()
    %cst_17 = arith.constant dense<0.000000e+00> : vector<4x8x32xf32>
    %60 = tpu.matmul %59, %42, %cst_17 {dimension_numbers = #tpu.dot_dimension_numbers<[2], [1], [1], [2], [0, 0, 0, 1, 1, 2], [0], [0]>} : vector<4x8x8xbf16>, vector<4x8x32xbf16>, vector<4x8x32xf32> -> vector<4x8x32xf32>
    "tpu.trace_stop"() : () -> ()
    %61 = vector.extract_strided_slice %60 {offsets = [0, 0, 0], sizes = [1, 8, 32], strides = [1, 1, 1]} : vector<4x8x32xf32> to vector<1x8x32xf32>
    %62 = vector.shape_cast %61 : vector<1x8x32xf32> to vector<8x32xf32>
    %63 = vector.extract_strided_slice %60 {offsets = [1, 0, 0], sizes = [1, 8, 32], strides = [1, 1, 1]} : vector<4x8x32xf32> to vector<1x8x32xf32>
    %64 = vector.shape_cast %63 : vector<1x8x32xf32> to vector<8x32xf32>
    %65 = vector.extract_strided_slice %60 {offsets = [2, 0, 0], sizes = [1, 8, 32], strides = [1, 1, 1]} : vector<4x8x32xf32> to vector<1x8x32xf32>
    %66 = vector.shape_cast %65 : vector<1x8x32xf32> to vector<8x32xf32>
    %67 = vector.extract_strided_slice %60 {offsets = [3, 0, 0], sizes = [1, 8, 32], strides = [1, 1, 1]} : vector<4x8x32xf32> to vector<1x8x32xf32>
    %68 = vector.shape_cast %67 : vector<1x8x32xf32> to vector<8x32xf32>
    %69 = tpu.concatenate %62, %64, %66, %68 in 1 : vector<8x32xf32>, vector<8x32xf32>, vector<8x32xf32>, vector<8x32xf32> -> vector<8x128xf32>
    %70 = arith.truncf %69 : vector<8x128xf32> to vector<8x128xbf16>
    %c0_18 = arith.constant 0 : index
    %c0_19 = arith.constant 0 : index
    %71 = vector.load %arg6[%c0_18, %c0_19] : memref<128x128xbf16, #tpu.memory_space<vmem>>, vector<128x128xbf16>
    %cst_20 = arith.constant dense<0.000000e+00> : vector<8x128xf32>
    %72 = tpu.matmul %70, %71, %cst_20 {dimension_numbers = #tpu.dot_dimension_numbers<[1], [0], [0], [1], [0, 0, 1, 1], [], []>} : vector<8x128xbf16>, vector<128x128xbf16>, vector<8x128xf32> -> vector<8x128xf32>
    %73 = vector.broadcast %12 : vector<1x128xf32> to vector<8x128xf32>
    %74 = arith.addf %72, %73 : vector<8x128xf32>
    %75 = arith.addf %1, %74 : vector<8x128xf32>
    %c2 = arith.constant 2 : index
    %c0_21 = arith.constant 0 : index
    %76 = vector.load %arg12[%c2, %c0_21] : memref<13x384xf32, #tpu.memory_space<vmem>>, vector<1x128xf32>
    %c3 = arith.constant 3 : index
    %c0_22 = arith.constant 0 : index
    %77 = vector.load %arg12[%c3, %c0_22] : memref<13x384xf32, #tpu.memory_space<vmem>>, vector<1x128xf32>
    %cst_23 = arith.constant dense<0.000000e+00> : vector<8xf32>
    %78 = vector.multi_reduction <add>, %75, %cst_23 [1] : vector<8x128xf32> to vector<8xf32>
    %79 = vector.shape_cast %78 : vector<8xf32> to vector<8x1xf32>
    %cst_24 = arith.constant 1.280000e+02 : f32
    %80 = vector.broadcast %cst_24 : f32 to vector<8x1xf32>
    %81 = arith.divf %79, %80 : vector<8x1xf32>
    %82 = vector.broadcast %81 : vector<8x1xf32> to vector<8x128xf32>
    %83 = arith.subf %75, %82 : vector<8x128xf32>
    %84 = arith.mulf %83, %83 : vector<8x128xf32>
    %cst_25 = arith.constant dense<0.000000e+00> : vector<8xf32>
    %85 = vector.multi_reduction <add>, %84, %cst_25 [1] : vector<8x128xf32> to vector<8xf32>
    %86 = vector.shape_cast %85 : vector<8xf32> to vector<8x1xf32>
    %cst_26 = arith.constant 1.280000e+02 : f32
    %87 = vector.broadcast %cst_26 : f32 to vector<8x1xf32>
    %88 = arith.divf %86, %87 : vector<8x1xf32>
    %89 = vector.broadcast %81 : vector<8x1xf32> to vector<8x128xf32>
    %90 = arith.subf %75, %89 : vector<8x128xf32>
    %cst_27 = arith.constant 9.99999974E-6 : f32
    %91 = vector.broadcast %cst_27 : f32 to vector<8x1xf32>
    %92 = arith.addf %88, %91 : vector<8x1xf32>
    %93 = math.rsqrt %92 : vector<8x1xf32>
    %94 = vector.broadcast %93 : vector<8x1xf32> to vector<8x128xf32>
    %95 = arith.mulf %90, %94 : vector<8x128xf32>
    %96 = vector.broadcast %76 : vector<1x128xf32> to vector<8x128xf32>
    %97 = arith.mulf %95, %96 : vector<8x128xf32>
    %98 = vector.broadcast %77 : vector<1x128xf32> to vector<8x128xf32>
    %99 = arith.addf %97, %98 : vector<8x128xf32>
    %100 = arith.truncf %99 : vector<8x128xf32> to vector<8x128xbf16>
    %c0_28 = arith.constant 0 : index
    %c0_29 = arith.constant 0 : index
    %101 = vector.load %arg7[%c0_28, %c0_29] : memref<128x128xbf16, #tpu.memory_space<vmem>>, vector<128x128xbf16>
    %cst_30 = arith.constant dense<0.000000e+00> : vector<8x128xf32>
    %102 = tpu.matmul %100, %101, %cst_30 {dimension_numbers = #tpu.dot_dimension_numbers<[1], [0], [0], [1], [0, 0, 1, 1], [], []>} : vector<8x128xbf16>, vector<128x128xbf16>, vector<8x128xf32> -> vector<8x128xf32>
    %c4 = arith.constant 4 : index
    %c0_31 = arith.constant 0 : index
    %103 = vector.load %arg12[%c4, %c0_31] : memref<13x384xf32, #tpu.memory_space<vmem>>, vector<1x128xf32>
    %104 = vector.broadcast %103 : vector<1x128xf32> to vector<8x128xf32>
    %105 = arith.addf %102, %104 : vector<8x128xf32>
    %106 = arith.truncf %3 : vector<8x128xf32> to vector<8x128xbf16>
    %c0_32 = arith.constant 0 : index
    %c0_33 = arith.constant 0 : index
    %107 = vector.load %arg8[%c0_32, %c0_33] : memref<128x256xbf16, #tpu.memory_space<vmem>>, vector<128x256xbf16>
    %cst_34 = arith.constant dense<0.000000e+00> : vector<8x256xf32>
    %108 = tpu.matmul %106, %107, %cst_34 {dimension_numbers = #tpu.dot_dimension_numbers<[1], [0], [0], [1], [0, 0, 1, 1], [], []>} : vector<8x128xbf16>, vector<128x256xbf16>, vector<8x256xf32> -> vector<8x256xf32>
    %c5 = arith.constant 5 : index
    %c0_35 = arith.constant 0 : index
    %109 = vector.load %arg12[%c5, %c0_35] : memref<13x384xf32, #tpu.memory_space<vmem>>, vector<1x256xf32>
    %110 = vector.broadcast %109 : vector<1x256xf32> to vector<8x256xf32>
    %111 = arith.addf %108, %110 : vector<8x256xf32>
    %c0_36 = arith.constant 0 : index
    %c0_37 = arith.constant 0 : index
    %c0_38 = arith.constant 0 : index
    %112 = vector.load %arg4[%c0_36, %c0_37, %c0_38] : memref<1x1x8xf32, #tpu.memory_space<vmem>>, vector<1x1x8xf32>
    %113 = vector.shape_cast %112 : vector<1x1x8xf32> to vector<1x8xf32>
    %c6 = arith.constant 6 : index
    %c0_39 = arith.constant 0 : index
    %114 = vector.load %arg12[%c6, %c0_39] : memref<13x384xf32, #tpu.memory_space<vmem>>, vector<1x128xf32>
    %115 = vector.extract_strided_slice %105 {offsets = [0, 0], sizes = [8, 32], strides = [1, 1]} : vector<8x128xf32> to vector<8x32xf32>
    %116 = vector.extract_strided_slice %105 {offsets = [0, 32], sizes = [8, 32], strides = [1, 1]} : vector<8x128xf32> to vector<8x32xf32>
    %117 = vector.extract_strided_slice %105 {offsets = [0, 64], sizes = [8, 32], strides = [1, 1]} : vector<8x128xf32> to vector<8x32xf32>
    %118 = vector.extract_strided_slice %105 {offsets = [0, 96], sizes = [8, 32], strides = [1, 1]} : vector<8x128xf32> to vector<8x32xf32>
    %119 = vector.shape_cast %115 : vector<8x32xf32> to vector<1x8x32xf32>
    %120 = vector.shape_cast %116 : vector<8x32xf32> to vector<1x8x32xf32>
    %121 = vector.shape_cast %117 : vector<8x32xf32> to vector<1x8x32xf32>
    %122 = vector.shape_cast %118 : vector<8x32xf32> to vector<1x8x32xf32>
    %123 = tpu.concatenate %119, %120, %121, %122 in 0 : vector<1x8x32xf32>, vector<1x8x32xf32>, vector<1x8x32xf32>, vector<1x8x32xf32> -> vector<4x8x32xf32>
    %124 = arith.truncf %123 : vector<4x8x32xf32> to vector<4x8x32xbf16>
    %125 = vector.extract_strided_slice %111 {offsets = [0, 0], sizes = [8, 32], strides = [1, 1]} : vector<8x256xf32> to vector<8x32xf32>
    %126 = vector.extract_strided_slice %111 {offsets = [0, 32], sizes = [8, 32], strides = [1, 1]} : vector<8x256xf32> to vector<8x32xf32>
    %127 = vector.extract_strided_slice %111 {offsets = [0, 64], sizes = [8, 32], strides = [1, 1]} : vector<8x256xf32> to vector<8x32xf32>
    %128 = vector.extract_strided_slice %111 {offsets = [0, 96], sizes = [8, 32], strides = [1, 1]} : vector<8x256xf32> to vector<8x32xf32>
    %129 = vector.shape_cast %125 : vector<8x32xf32> to vector<1x8x32xf32>
    %130 = vector.shape_cast %126 : vector<8x32xf32> to vector<1x8x32xf32>
    %131 = vector.shape_cast %127 : vector<8x32xf32> to vector<1x8x32xf32>
    %132 = vector.shape_cast %128 : vector<8x32xf32> to vector<1x8x32xf32>
    %133 = tpu.concatenate %129, %130, %131, %132 in 0 : vector<1x8x32xf32>, vector<1x8x32xf32>, vector<1x8x32xf32>, vector<1x8x32xf32> -> vector<4x8x32xf32>
    %134 = arith.truncf %133 : vector<4x8x32xf32> to vector<4x8x32xbf16>
    %135 = vector.extract_strided_slice %111 {offsets = [0, 128], sizes = [8, 32], strides = [1, 1]} : vector<8x256xf32> to vector<8x32xf32>
    %136 = vector.extract_strided_slice %111 {offsets = [0, 160], sizes = [8, 32], strides = [1, 1]} : vector<8x256xf32> to vector<8x32xf32>
    %137 = vector.extract_strided_slice %111 {offsets = [0, 192], sizes = [8, 32], strides = [1, 1]} : vector<8x256xf32> to vector<8x32xf32>
    %138 = vector.extract_strided_slice %111 {offsets = [0, 224], sizes = [8, 32], strides = [1, 1]} : vector<8x256xf32> to vector<8x32xf32>
    %139 = vector.shape_cast %135 : vector<8x32xf32> to vector<1x8x32xf32>
    %140 = vector.shape_cast %136 : vector<8x32xf32> to vector<1x8x32xf32>
    %141 = vector.shape_cast %137 : vector<8x32xf32> to vector<1x8x32xf32>
    %142 = vector.shape_cast %138 : vector<8x32xf32> to vector<1x8x32xf32>
    %143 = tpu.concatenate %139, %140, %141, %142 in 0 : vector<1x8x32xf32>, vector<1x8x32xf32>, vector<1x8x32xf32>, vector<1x8x32xf32> -> vector<4x8x32xf32>
    %144 = arith.truncf %143 : vector<4x8x32xf32> to vector<4x8x32xbf16>
    "tpu.trace_start"() <{level = 10 : i32, message = "hqd,hkd->hqk"}> : () -> ()
    %cst_40 = arith.constant dense<0.000000e+00> : vector<4x8x8xf32>
    %145 = tpu.matmul %124, %134, %cst_40 {dimension_numbers = #tpu.dot_dimension_numbers<[2], [2], [1], [1], [0, 0, 0, 1, 1, 1], [0], [0]>} : vector<4x8x32xbf16>, vector<4x8x32xbf16>, vector<4x8x8xf32> -> vector<4x8x8xf32>
    "tpu.trace_stop"() : () -> ()
    %cst_41 = arith.constant 0.176776692 : f32
    %146 = vector.broadcast %cst_41 : f32 to vector<4x8x8xf32>
    %147 = arith.mulf %145, %146 : vector<4x8x8xf32>
    %148 = vector.shape_cast %113 : vector<1x8xf32> to vector<1x1x8xf32>
    %149 = vector.broadcast %148 : vector<1x1x8xf32> to vector<4x8x8xf32>
    %150 = arith.addf %147, %149 : vector<4x8x8xf32>
    %cst_42 = arith.constant dense<0xFF800000> : vector<4x8xf32>
    %151 = vector.multi_reduction <maximumf>, %150, %cst_42 [2] : vector<4x8x8xf32> to vector<4x8xf32>
    %152 = vector.shape_cast %151 : vector<4x8xf32> to vector<4x8x1xf32>
    %153 = vector.broadcast %152 : vector<4x8x1xf32> to vector<4x8x8xf32>
    %154 = arith.subf %150, %153 : vector<4x8x8xf32>
    %155 = math.exp %154 : vector<4x8x8xf32>
    %cst_43 = arith.constant dense<0.000000e+00> : vector<4x8xf32>
    %156 = vector.multi_reduction <add>, %155, %cst_43 [2] : vector<4x8x8xf32> to vector<4x8xf32>
    %157 = vector.shape_cast %156 : vector<4x8xf32> to vector<4x8x1xf32>
    %158 = tpu.reciprocal %157 {approx = true} : vector<4x8x1xf32> -> vector<4x8x1xf32>
    %159 = vector.broadcast %158 : vector<4x8x1xf32> to vector<4x8x8xf32>
    %160 = arith.mulf %155, %159 : vector<4x8x8xf32>
    %161 = arith.truncf %160 : vector<4x8x8xf32> to vector<4x8x8xbf16>
    "tpu.trace_start"() <{level = 10 : i32, message = "hqk,hkd->hqd"}> : () -> ()
    %cst_44 = arith.constant dense<0.000000e+00> : vector<4x8x32xf32>
    %162 = tpu.matmul %161, %144, %cst_44 {dimension_numbers = #tpu.dot_dimension_numbers<[2], [1], [1], [2], [0, 0, 0, 1, 1, 2], [0], [0]>} : vector<4x8x8xbf16>, vector<4x8x32xbf16>, vector<4x8x32xf32> -> vector<4x8x32xf32>
    "tpu.trace_stop"() : () -> ()
    %163 = vector.extract_strided_slice %162 {offsets = [0, 0, 0], sizes = [1, 8, 32], strides = [1, 1, 1]} : vector<4x8x32xf32> to vector<1x8x32xf32>
    %164 = vector.shape_cast %163 : vector<1x8x32xf32> to vector<8x32xf32>
    %165 = vector.extract_strided_slice %162 {offsets = [1, 0, 0], sizes = [1, 8, 32], strides = [1, 1, 1]} : vector<4x8x32xf32> to vector<1x8x32xf32>
    %166 = vector.shape_cast %165 : vector<1x8x32xf32> to vector<8x32xf32>
    %167 = vector.extract_strided_slice %162 {offsets = [2, 0, 0], sizes = [1, 8, 32], strides = [1, 1, 1]} : vector<4x8x32xf32> to vector<1x8x32xf32>
    %168 = vector.shape_cast %167 : vector<1x8x32xf32> to vector<8x32xf32>
    %169 = vector.extract_strided_slice %162 {offsets = [3, 0, 0], sizes = [1, 8, 32], strides = [1, 1, 1]} : vector<4x8x32xf32> to vector<1x8x32xf32>
    %170 = vector.shape_cast %169 : vector<1x8x32xf32> to vector<8x32xf32>
    %171 = tpu.concatenate %164, %166, %168, %170 in 1 : vector<8x32xf32>, vector<8x32xf32>, vector<8x32xf32>, vector<8x32xf32> -> vector<8x128xf32>
    %172 = arith.truncf %171 : vector<8x128xf32> to vector<8x128xbf16>
    %c0_45 = arith.constant 0 : index
    %c0_46 = arith.constant 0 : index
    %173 = vector.load %arg9[%c0_45, %c0_46] : memref<128x128xbf16, #tpu.memory_space<vmem>>, vector<128x128xbf16>
    %cst_47 = arith.constant dense<0.000000e+00> : vector<8x128xf32>
    %174 = tpu.matmul %172, %173, %cst_47 {dimension_numbers = #tpu.dot_dimension_numbers<[1], [0], [0], [1], [0, 0, 1, 1], [], []>} : vector<8x128xbf16>, vector<128x128xbf16>, vector<8x128xf32> -> vector<8x128xf32>
    %175 = vector.broadcast %114 : vector<1x128xf32> to vector<8x128xf32>
    %176 = arith.addf %174, %175 : vector<8x128xf32>
    %177 = arith.addf %99, %176 : vector<8x128xf32>
    %c7 = arith.constant 7 : index
    %c0_48 = arith.constant 0 : index
    %178 = vector.load %arg12[%c7, %c0_48] : memref<13x384xf32, #tpu.memory_space<vmem>>, vector<1x128xf32>
    %c8 = arith.constant 8 : index
    %c0_49 = arith.constant 0 : index
    %179 = vector.load %arg12[%c8, %c0_49] : memref<13x384xf32, #tpu.memory_space<vmem>>, vector<1x128xf32>
    %cst_50 = arith.constant dense<0.000000e+00> : vector<8xf32>
    %180 = vector.multi_reduction <add>, %177, %cst_50 [1] : vector<8x128xf32> to vector<8xf32>
    %181 = vector.shape_cast %180 : vector<8xf32> to vector<8x1xf32>
    %cst_51 = arith.constant 1.280000e+02 : f32
    %182 = vector.broadcast %cst_51 : f32 to vector<8x1xf32>
    %183 = arith.divf %181, %182 : vector<8x1xf32>
    %184 = vector.broadcast %183 : vector<8x1xf32> to vector<8x128xf32>
    %185 = arith.subf %177, %184 : vector<8x128xf32>
    %186 = arith.mulf %185, %185 : vector<8x128xf32>
    %cst_52 = arith.constant dense<0.000000e+00> : vector<8xf32>
    %187 = vector.multi_reduction <add>, %186, %cst_52 [1] : vector<8x128xf32> to vector<8xf32>
    %188 = vector.shape_cast %187 : vector<8xf32> to vector<8x1xf32>
    %cst_53 = arith.constant 1.280000e+02 : f32
    %189 = vector.broadcast %cst_53 : f32 to vector<8x1xf32>
    %190 = arith.divf %188, %189 : vector<8x1xf32>
    %191 = vector.broadcast %183 : vector<8x1xf32> to vector<8x128xf32>
    %192 = arith.subf %177, %191 : vector<8x128xf32>
    %cst_54 = arith.constant 9.99999974E-6 : f32
    %193 = vector.broadcast %cst_54 : f32 to vector<8x1xf32>
    %194 = arith.addf %190, %193 : vector<8x1xf32>
    %195 = math.rsqrt %194 : vector<8x1xf32>
    %196 = vector.broadcast %195 : vector<8x1xf32> to vector<8x128xf32>
    %197 = arith.mulf %192, %196 : vector<8x128xf32>
    %198 = vector.broadcast %178 : vector<1x128xf32> to vector<8x128xf32>
    %199 = arith.mulf %197, %198 : vector<8x128xf32>
    %200 = vector.broadcast %179 : vector<1x128xf32> to vector<8x128xf32>
    %201 = arith.addf %199, %200 : vector<8x128xf32>
    %202 = arith.truncf %201 : vector<8x128xf32> to vector<8x128xbf16>
    %c0_55 = arith.constant 0 : index
    %c0_56 = arith.constant 0 : index
    %203 = vector.load %arg10[%c0_55, %c0_56] : memref<128x256xbf16, #tpu.memory_space<vmem>>, vector<128x256xbf16>
    %cst_57 = arith.constant dense<0.000000e+00> : vector<8x256xf32>
    %204 = tpu.matmul %202, %203, %cst_57 {dimension_numbers = #tpu.dot_dimension_numbers<[1], [0], [0], [1], [0, 0, 1, 1], [], []>} : vector<8x128xbf16>, vector<128x256xbf16>, vector<8x256xf32> -> vector<8x256xf32>
    %c9 = arith.constant 9 : index
    %c0_58 = arith.constant 0 : index
    %205 = vector.load %arg12[%c9, %c0_58] : memref<13x384xf32, #tpu.memory_space<vmem>>, vector<1x256xf32>
    %206 = vector.broadcast %205 : vector<1x256xf32> to vector<8x256xf32>
    %207 = arith.addf %204, %206 : vector<8x256xf32>
    %cst_59 = arith.constant 0.000000e+00 : f32
    %208 = vector.broadcast %cst_59 : f32 to vector<8x256xf32>
    %209 = arith.maximumf %207, %208 : vector<8x256xf32>
    %210 = arith.truncf %209 : vector<8x256xf32> to vector<8x256xbf16>
    %c0_60 = arith.constant 0 : index
    %c0_61 = arith.constant 0 : index
    %211 = vector.load %arg11[%c0_60, %c0_61] : memref<256x128xbf16, #tpu.memory_space<vmem>>, vector<256x128xbf16>
    %cst_62 = arith.constant dense<0.000000e+00> : vector<8x128xf32>
    %212 = tpu.matmul %210, %211, %cst_62 {dimension_numbers = #tpu.dot_dimension_numbers<[1], [0], [0], [1], [0, 0, 1, 1], [], []>} : vector<8x256xbf16>, vector<256x128xbf16>, vector<8x128xf32> -> vector<8x128xf32>
    %c10 = arith.constant 10 : index
    %c0_63 = arith.constant 0 : index
    %213 = vector.load %arg12[%c10, %c0_63] : memref<13x384xf32, #tpu.memory_space<vmem>>, vector<1x128xf32>
    %214 = vector.broadcast %213 : vector<1x128xf32> to vector<8x128xf32>
    %215 = arith.addf %212, %214 : vector<8x128xf32>
    %216 = arith.addf %201, %215 : vector<8x128xf32>
    %c11 = arith.constant 11 : index
    %c0_64 = arith.constant 0 : index
    %217 = vector.load %arg12[%c11, %c0_64] : memref<13x384xf32, #tpu.memory_space<vmem>>, vector<1x128xf32>
    %c12 = arith.constant 12 : index
    %c0_65 = arith.constant 0 : index
    %218 = vector.load %arg12[%c12, %c0_65] : memref<13x384xf32, #tpu.memory_space<vmem>>, vector<1x128xf32>
    %cst_66 = arith.constant dense<0.000000e+00> : vector<8xf32>
    %219 = vector.multi_reduction <add>, %216, %cst_66 [1] : vector<8x128xf32> to vector<8xf32>
    %220 = vector.shape_cast %219 : vector<8xf32> to vector<8x1xf32>
    %cst_67 = arith.constant 1.280000e+02 : f32
    %221 = vector.broadcast %cst_67 : f32 to vector<8x1xf32>
    %222 = arith.divf %220, %221 : vector<8x1xf32>
    %223 = vector.broadcast %222 : vector<8x1xf32> to vector<8x128xf32>
    %224 = arith.subf %216, %223 : vector<8x128xf32>
    %225 = arith.mulf %224, %224 : vector<8x128xf32>
    %cst_68 = arith.constant dense<0.000000e+00> : vector<8xf32>
    %226 = vector.multi_reduction <add>, %225, %cst_68 [1] : vector<8x128xf32> to vector<8xf32>
    %227 = vector.shape_cast %226 : vector<8xf32> to vector<8x1xf32>
    %cst_69 = arith.constant 1.280000e+02 : f32
    %228 = vector.broadcast %cst_69 : f32 to vector<8x1xf32>
    %229 = arith.divf %227, %228 : vector<8x1xf32>
    %230 = vector.broadcast %222 : vector<8x1xf32> to vector<8x128xf32>
    %231 = arith.subf %216, %230 : vector<8x128xf32>
    %cst_70 = arith.constant 9.99999974E-6 : f32
    %232 = vector.broadcast %cst_70 : f32 to vector<8x1xf32>
    %233 = arith.addf %229, %232 : vector<8x1xf32>
    %234 = math.rsqrt %233 : vector<8x1xf32>
    %235 = vector.broadcast %234 : vector<8x1xf32> to vector<8x128xf32>
    %236 = arith.mulf %231, %235 : vector<8x128xf32>
    %237 = vector.broadcast %217 : vector<1x128xf32> to vector<8x128xf32>
    %238 = arith.mulf %236, %237 : vector<8x128xf32>
    %239 = vector.broadcast %218 : vector<1x128xf32> to vector<8x128xf32>
    %240 = arith.addf %238, %239 : vector<8x128xf32>
    %c0_71 = arith.constant 0 : index
    %c0_72 = arith.constant 0 : index
    %c0_73 = arith.constant 0 : index
    %241 = vector.load %arg13[%c0_71, %c0_72, %c0_73] : memref<1x8x128xf32, #tpu.memory_space<vmem>>, vector<1x8x128xf32>
    %242 = vector.shape_cast %241 : vector<1x8x128xf32> to vector<8x128xf32>
    %243 = vector.shape_cast %240 : vector<8x128xf32> to vector<1x8x128xf32>
    tpu.vector_store %arg13[%c0_71, %c0_72, %c0_73], %243 {strides = array<i32>} : memref<1x8x128xf32, #tpu.memory_space<vmem>>, vector<1x8x128xf32>,
    return
  }
  func.func @transform_0(%arg0: i32) -> (i32, i32, i32) {
    %c0_i32 = arith.constant 0 : i32
    %c0_i32_0 = arith.constant 0 : i32
    %c0_i32_1 = arith.constant 0 : i32
    return %arg0, %c0_i32, %c0_i32_0 : i32, i32, i32
  }
  func.func @transform_1(%arg0: i32) -> (i32, i32, i32) {
    %c0_i32 = arith.constant 0 : i32
    %c0_i32_0 = arith.constant 0 : i32
    %c0_i32_1 = arith.constant 0 : i32
    return %arg0, %c0_i32, %c0_i32_0 : i32, i32, i32
  }
  func.func @transform_2(%arg0: i32) -> (i32, i32, i32) {
    %c0_i32 = arith.constant 0 : i32
    %c0_i32_0 = arith.constant 0 : i32
    %c0_i32_1 = arith.constant 0 : i32
    return %arg0, %c0_i32, %c0_i32_0 : i32, i32, i32
  }
  func.func @transform_3(%arg0: i32) -> (i32, i32, i32) {
    %c0_i32 = arith.constant 0 : i32
    %c0_i32_0 = arith.constant 0 : i32
    %c0_i32_1 = arith.constant 0 : i32
    return %arg0, %c0_i32, %c0_i32_0 : i32, i32, i32
  }
  func.func @transform_4(%arg0: i32) -> (i32, i32) {
    %c0_i32 = arith.constant 0 : i32
    %c0_i32_0 = arith.constant 0 : i32
    %c0_i32_1 = arith.constant 0 : i32
    return %c0_i32, %c0_i32_0 : i32, i32
  }
  func.func @transform_5(%arg0: i32) -> (i32, i32) {
    %c0_i32 = arith.constant 0 : i32
    %c0_i32_0 = arith.constant 0 : i32
    %c0_i32_1 = arith.constant 0 : i32
    return %c0_i32, %c0_i32_0 : i32, i32
  }
  func.func @transform_6(%arg0: i32) -> (i32, i32) {
    %c0_i32 = arith.constant 0 : i32
    %c0_i32_0 = arith.constant 0 : i32
    %c0_i32_1 = arith.constant 0 : i32
    return %c0_i32, %c0_i32_0 : i32, i32
  }
  func.func @transform_7(%arg0: i32) -> (i32, i32) {
    %c0_i32 = arith.constant 0 : i32
    %c0_i32_0 = arith.constant 0 : i32
    %c0_i32_1 = arith.constant 0 : i32
    return %c0_i32, %c0_i32_0 : i32, i32
  }
  func.func @transform_8(%arg0: i32) -> (i32, i32) {
    %c0_i32 = arith.constant 0 : i32
    %c0_i32_0 = arith.constant 0 : i32
    %c0_i32_1 = arith.constant 0 : i32
    return %c0_i32, %c0_i32_0 : i32, i32
  }
  func.func @transform_9(%arg0: i32) -> (i32, i32) {
    %c0_i32 = arith.constant 0 : i32
    %c0_i32_0 = arith.constant 0 : i32
    %c0_i32_1 = arith.constant 0 : i32
    return %c0_i32, %c0_i32_0 : i32, i32
  }
  func.func @transform_10(%arg0: i32) -> (i32, i32) {
    %c0_i32 = arith.constant 0 : i32
    %c0_i32_0 = arith.constant 0 : i32
    %c0_i32_1 = arith.constant 0 : i32
    return %c0_i32, %c0_i32_0 : i32, i32
  }
  func.func @transform_11(%arg0: i32) -> (i32, i32) {
    %c0_i32 = arith.constant 0 : i32
    %c0_i32_0 = arith.constant 0 : i32
    %c0_i32_1 = arith.constant 0 : i32
    return %c0_i32, %c0_i32_0 : i32, i32
  }
  func.func @transform_12(%arg0: i32) -> (i32, i32, i32) {
    %c0_i32 = arith.constant 0 : i32
    %c0_i32_0 = arith.constant 0 : i32
    %c0_i32_1 = arith.constant 0 : i32
    return %arg0, %c0_i32, %c0_i32_0 : i32, i32, i32
  }
}

</mosaic_0001>

<llo_original>
// kernel: decoder_layer_forward.1
$region0: #{decoder_layer_forward.1}
  #allocation0 [shape = 'u32[]', space=smem, size = 0x4, offset = 0x4, fixed_abs, tag = 'smem constant byte address 0x4 - core index']
  #allocation1 [shape = 'u32[144,128]{1,0:T(1,128)}', space=vmem, size = 0x12000, scoped, tag = 'internal scratch']
  %s0 = inlined_call_operand.vmem [shape: f32[2,8,128], index: 0, kind: input, shape index: {}]
  %s1 = inlined_call_operand.vmem [shape: f32[2,8,128], index: 1, kind: input, shape index: {}]
  %s2 = inlined_call_operand.vmem [shape: f32[2,1,8], index: 2, kind: input, shape index: {}]
  %s3 = inlined_call_operand.vmem [shape: f32[2,1,8], index: 3, kind: input, shape index: {}]
  %s4 = inlined_call_operand.vmem [shape: bf16[128,384], index: 4, kind: input, shape index: {}]
  %s5 = inlined_call_operand.vmem [shape: bf16[128,128], index: 5, kind: input, shape index: {}]
  %s6 = inlined_call_operand.vmem [shape: bf16[128,128], index: 6, kind: input, shape index: {}]
  %s7 = inlined_call_operand.vmem [shape: bf16[128,256], index: 7, kind: input, shape index: {}]
  %s8 = inlined_call_operand.vmem [shape: bf16[128,128], index: 8, kind: input, shape index: {}]
  %s9 = inlined_call_operand.vmem [shape: bf16[128,256], index: 9, kind: input, shape index: {}]
  %s10 = inlined_call_operand.vmem [shape: bf16[256,128], index: 10, kind: input, shape index: {}]
  %s11 = inlined_call_operand.vmem [shape: f32[13,384], index: 11, kind: input, shape index: {}]
  %s12 = inlined_call_operand.hbm [shape: f32[2,8,128], index: 12, kind: output, shape index: {}]
  %s13 = sld [smem:[#allocation0]]
  $region81: #{decoder_layer_forward.1} parent=0
    _
  %s15 = ssub.s32 1, %s13
  %s16 = scalar_select 0, %s15, %s13
  $region1: #{decoder_layer_forward.1} parent=0
    #allocation2 [shape = 'u8[8192]{0}', space=vmem, size = 0x2000, scoped, tag = 'output window, operand 0']
    #allocation3 [shape = 's32[2]{0}', space=sflag, size = 0x8, scoped, tag = 'scoped memory for decoder_layer_forward.1']
    %17 = vsyncpa [#allocation3], 0
    %s18 = scalar_lea.sflag [#allocation3], 1
    %19 = vsyncpa %s18, 0
    loop: start=0, step=1, limit=4
    $region2: #{decoder_layer_forward.1} parent=1 // loop_pre_header
      _
    $region3: #{decoder_layer_forward.1} parent=1 // loop_header
      %s21 = sphi 0, %s25
      %p22 = scmp.ge.s32.totalorder %s21, 4
      %s31 = sphi 0, %s33
      %s34 = sphi 0, %s31
      %s35 = sphi 0, %s34
      %s51 = sphi 0, %s35
      %s57 = sphi 0, %s59
      %s60 = sphi 0, %s57
      %s61 = sphi 0, %s60
      %s77 = sphi 0, %s61
      %s83 = sphi 0, %s85
      %s86 = sphi 0, %s83
      %s87 = sphi 0, %s86
      %s103 = sphi 0, %s87
      %s109 = sphi 0, %s111
      %s112 = sphi 0, %s109
      %s113 = sphi 0, %s112
      %s129 = sphi 0, %s113
      %s133 = sphi 0, %s133
      %s135 = sphi 0, %s133
      %s136 = sphi 0, %s135
      %s150 = sphi 0, %s136
      %s154 = sphi 0, %s154
      %s156 = sphi 0, %s154
      %s157 = sphi 0, %s156
      %s171 = sphi 0, %s157
      %s175 = sphi 0, %s175
      %s177 = sphi 0, %s175
      %s178 = sphi 0, %s177
      %s192 = sphi 0, %s178
      %s196 = sphi 0, %s196
      %s198 = sphi 0, %s196
      %s199 = sphi 0, %s198
      %s213 = sphi 0, %s199
      %s217 = sphi 0, %s217
      %s219 = sphi 0, %s217
      %s220 = sphi 0, %s219
      %s234 = sphi 0, %s220
      %s238 = sphi 0, %s238
      %s240 = sphi 0, %s238
      %s241 = sphi 0, %s240
      %s255 = sphi 0, %s241
      %s259 = sphi 0, %s259
      %s261 = sphi 0, %s259
      %s262 = sphi 0, %s261
      %s276 = sphi 0, %s262
      %s280 = sphi 0, %s280
      %s282 = sphi 0, %s280
      %s283 = sphi 0, %s282
      %s297 = sphi 0, %s283
      %s303 = sphi 0, %s305
      %s306 = sphi 0, %s303
      %s307 = sphi 0, %s306
      %s323 = sphi 0, %s307
    $region4: #{decoder_layer_forward.1} parent=1 // loop_header_branch
      %24 = sbr.rel (%p22) target = $region8
    $region5: #{decoder_layer_forward.1} parent=1 // loop_body
      %s26 = ssub.s32 %s21, 1
      %s27 = ssub.s32 %s21, 2
      %s28 = sadd.s32 %s21, 1
      %s29 = ssub.s32 %s21, %s28
      %p30 = scmp.eq.s32.totalorder %s29, 0
      %s32 = sadd.s32 %s31, 1
      %s33 = scalar_select %p30, %s31, %s32
      %p36 = pneg %p30
      %p37 = scmp.eq.s32.totalorder %s21, 1
      %p38 = por %p36, %p37
      %p39 = scmp.ne.s32.totalorder %s31, %s34
      %p40 = scmp.eq.s32.totalorder %s21, 0
      %p41 = por %p39, %p40
      %p42 = scmp.ne.s32.totalorder %s31, %s34
      %p43 = scmp.eq.s32.totalorder %s26, 1
      %p44 = por %p42, %p43
      %p45 = scmp.ne.s32.totalorder %s34, %s35
      %p46 = scmp.eq.s32.totalorder %s26, 0
      %p47 = por %p45, %p46
      %p48 = scmp.ne.s32.totalorder %s34, %s35
      %p49 = scmp.eq.s32.totalorder %s27, 1
      %p50 = por %p48, %p49
      %p52 = scmp.ne.s32.totalorder %s35, %s51
      %p53 = scmp.eq.s32.totalorder %s27, 0
      %p54 = por %p52, %p53
      %s55 = ssub.s32 %s21, %s28
      %p56 = scmp.eq.s32.totalorder %s55, 0
      %s58 = sadd.s32 %s57, 1
      %s59 = scalar_select %p56, %s57, %s58
      %p62 = pneg %p56
      %p63 = scmp.eq.s32.totalorder %s21, 1
      %p64 = por %p62, %p63
      %p65 = scmp.ne.s32.totalorder %s57, %s60
      %p66 = scmp.eq.s32.totalorder %s21, 0
      %p67 = por %p65, %p66
      %p68 = scmp.ne.s32.totalorder %s57, %s60
      %p69 = scmp.eq.s32.totalorder %s26, 1
      %p70 = por %p68, %p69
      %p71 = scmp.ne.s32.totalorder %s60, %s61
      %p72 = scmp.eq.s32.totalorder %s26, 0
      %p73 = por %p71, %p72
      %p74 = scmp.ne.s32.totalorder %s60, %s61
      %p75 = scmp.eq.s32.totalorder %s27, 1
      %p76 = por %p74, %p75
      %p78 = scmp.ne.s32.totalorder %s61, %s77
      %p79 = scmp.eq.s32.totalorder %s27, 0
      %p80 = por %p78, %p79
      %s81 = ssub.s32 %s21, %s28
      %p82 = scmp.eq.s32.totalorder %s81, 0
      %s84 = sadd.s32 %s83, 1
      %s85 = scalar_select %p82, %s83, %s84
      %p88 = pneg %p82
      %p89 = scmp.eq.s32.totalorder %s21, 1
      %p90 = por %p88, %p89
      %p91 = scmp.ne.s32.totalorder %s83, %s86
      %p92 = scmp.eq.s32.totalorder %s21, 0
      %p93 = por %p91, %p92
      %p94 = scmp.ne.s32.totalorder %s83, %s86
      %p95 = scmp.eq.s32.totalorder %s26, 1
      %p96 = por %p94, %p95
      %p97 = scmp.ne.s32.totalorder %s86, %s87
      %p98 = scmp.eq.s32.totalorder %s26, 0
      %p99 = por %p97, %p98
      %p100 = scmp.ne.s32.totalorder %s86, %s87
      %p101 = scmp.eq.s32.totalorder %s27, 1
      %p102 = por %p100, %p101
      %p104 = scmp.ne.s32.totalorder %s87, %s103
      %p105 = scmp.eq.s32.totalorder %s27, 0
      %p106 = por %p104, %p105
      %s107 = ssub.s32 %s21, %s28
      %p108 = scmp.eq.s32.totalorder %s107, 0
      %s110 = sadd.s32 %s109, 1
      %s111 = scalar_select %p108, %s109, %s110
      %p114 = pneg %p108
      %p115 = scmp.eq.s32.totalorder %s21, 1
      %p116 = por %p114, %p115
      %p117 = scmp.ne.s32.totalorder %s109, %s112
      %p118 = scmp.eq.s32.totalorder %s21, 0
      %p119 = por %p117, %p118
      %p120 = scmp.ne.s32.totalorder %s109, %s112
      %p121 = scmp.eq.s32.totalorder %s26, 1
      %p122 = por %p120, %p121
      %p123 = scmp.ne.s32.totalorder %s112, %s113
      %p124 = scmp.eq.s32.totalorder %s26, 0
      %p125 = por %p123, %p124
      %p126 = scmp.ne.s32.totalorder %s112, %s113
      %p127 = scmp.eq.s32.totalorder %s27, 1
      %p128 = por %p126, %p127
      %p130 = scmp.ne.s32.totalorder %s113, %s129
      %p131 = scmp.eq.s32.totalorder %s27, 0
      %p132 = por %p130, %p131
      %s134 = sadd.s32 %s133, 1
      %p137 = scmp.eq.s32.totalorder %s21, 1
      %p138 = scmp.ne.s32.totalorder %s133, %s135
      %p139 = scmp.eq.s32.totalorder %s21, 0
      %p140 = por %p138, %p139
      %p141 = scmp.ne.s32.totalorder %s133, %s135
      %p142 = scmp.eq.s32.totalorder %s26, 1
      %p143 = por %p141, %p142
      %p144 = scmp.ne.s32.totalorder %s135, %s136
      %p145 = scmp.eq.s32.totalorder %s26, 0
      %p146 = por %p144, %p145
      %p147 = scmp.ne.s32.totalorder %s135, %s136
      %p148 = scmp.eq.s32.totalorder %s27, 1
      %p149 = por %p147, %p148
      %p151 = scmp.ne.s32.totalorder %s136, %s150
      %p152 = scmp.eq.s32.totalorder %s27, 0
      %p153 = por %p151, %p152
      %s155 = sadd.s32 %s154, 1
      %p158 = scmp.eq.s32.totalorder %s21, 1
      %p159 = scmp.ne.s32.totalorder %s154, %s156
      %p160 = scmp.eq.s32.totalorder %s21, 0
      %p161 = por %p159, %p160
      %p162 = scmp.ne.s32.totalorder %s154, %s156
      %p163 = scmp.eq.s32.totalorder %s26, 1
      %p164 = por %p162, %p163
      %p165 = scmp.ne.s32.totalorder %s156, %s157
      %p166 = scmp.eq.s32.totalorder %s26, 0
      %p167 = por %p165, %p166
      %p168 = scmp.ne.s32.totalorder %s156, %s157
      %p169 = scmp.eq.s32.totalorder %s27, 1
      %p170 = por %p168, %p169
      %p172 = scmp.ne.s32.totalorder %s157, %s171
      %p173 = scmp.eq.s32.totalorder %s27, 0
      %p174 = por %p172, %p173
      %s176 = sadd.s32 %s175, 1
      %p179 = scmp.eq.s32.totalorder %s21, 1
      %p180 = scmp.ne.s32.totalorder %s175, %s177
      %p181 = scmp.eq.s32.totalorder %s21, 0
      %p182 = por %p180, %p181
      %p183 = scmp.ne.s32.totalorder %s175, %s177
      %p184 = scmp.eq.s32.totalorder %s26, 1
      %p185 = por %p183, %p184
      %p186 = scmp.ne.s32.totalorder %s177, %s178
      %p187 = scmp.eq.s32.totalorder %s26, 0
      %p188 = por %p186, %p187
      %p189 = scmp.ne.s32.totalorder %s177, %s178
      %p190 = scmp.eq.s32.totalorder %s27, 1
      %p191 = por %p189, %p190
      %p193 = scmp.ne.s32.totalorder %s178, %s192
      %p194 = scmp.eq.s32.totalorder %s27, 0
      %p195 = por %p193, %p194
      %s197 = sadd.s32 %s196, 1
      %p200 = scmp.eq.s32.totalorder %s21, 1
      %p201 = scmp.ne.s32.totalorder %s196, %s198
      %p202 = scmp.eq.s32.totalorder %s21, 0
      %p203 = por %p201, %p202
      %p204 = scmp.ne.s32.totalorder %s196, %s198
      %p205 = scmp.eq.s32.totalorder %s26, 1
      %p206 = por %p204, %p205
      %p207 = scmp.ne.s32.totalorder %s198, %s199
      %p208 = scmp.eq.s32.totalorder %s26, 0
      %p209 = por %p207, %p208
      %p210 = scmp.ne.s32.totalorder %s198, %s199
      %p211 = scmp.eq.s32.totalorder %s27, 1
      %p212 = por %p210, %p211
      %p214 = scmp.ne.s32.totalorder %s199, %s213
      %p215 = scmp.eq.s32.totalorder %s27, 0
      %p216 = por %p214, %p215
      %s218 = sadd.s32 %s217, 1
      %p221 = scmp.eq.s32.totalorder %s21, 1
      %p222 = scmp.ne.s32.totalorder %s217, %s219
      %p223 = scmp.eq.s32.totalorder %s21, 0
      %p224 = por %p222, %p223
      %p225 = scmp.ne.s32.totalorder %s217, %s219
      %p226 = scmp.eq.s32.totalorder %s26, 1
      %p227 = por %p225, %p226
      %p228 = scmp.ne.s32.totalorder %s219, %s220
      %p229 = scmp.eq.s32.totalorder %s26, 0
      %p230 = por %p228, %p229
      %p231 = scmp.ne.s32.totalorder %s219, %s220
      %p232 = scmp.eq.s32.totalorder %s27, 1
      %p233 = por %p231, %p232
      %p235 = scmp.ne.s32.totalorder %s220, %s234
      %p236 = scmp.eq.s32.totalorder %s27, 0
      %p237 = por %p235, %p236
      %s239 = sadd.s32 %s238, 1
      %p242 = scmp.eq.s32.totalorder %s21, 1
      %p243 = scmp.ne.s32.totalorder %s238, %s240
      %p244 = scmp.eq.s32.totalorder %s21, 0
      %p245 = por %p243, %p244
      %p246 = scmp.ne.s32.totalorder %s238, %s240
      %p247 = scmp.eq.s32.totalorder %s26, 1
      %p248 = por %p246, %p247
      %p249 = scmp.ne.s32.totalorder %s240, %s241
      %p250 = scmp.eq.s32.totalorder %s26, 0
      %p251 = por %p249, %p250
      %p252 = scmp.ne.s32.totalorder %s240, %s241
      %p253 = scmp.eq.s32.totalorder %s27, 1
      %p254 = por %p252, %p253
      %p256 = scmp.ne.s32.totalorder %s241, %s255
      %p257 = scmp.eq.s32.totalorder %s27, 0
      %p258 = por %p256, %p257
      %s260 = sadd.s32 %s259, 1
      %p263 = scmp.eq.s32.totalorder %s21, 1
      %p264 = scmp.ne.s32.totalorder %s259, %s261
      %p265 = scmp.eq.s32.totalorder %s21, 0
      %p266 = por %p264, %p265
      %p267 = scmp.ne.s32.totalorder %s259, %s261
      %p268 = scmp.eq.s32.totalorder %s26, 1
      %p269 = por %p267, %p268
      %p270 = scmp.ne.s32.totalorder %s261, %s262
      %p271 = scmp.eq.s32.totalorder %s26, 0
      %p272 = por %p270, %p271
      %p273 = scmp.ne.s32.totalorder %s261, %s262
      %p274 = scmp.eq.s32.totalorder %s27, 1
      %p275 = por %p273, %p274
      %p277 = scmp.ne.s32.totalorder %s262, %s276
      %p278 = scmp.eq.s32.totalorder %s27, 0
      %p279 = por %p277, %p278
      %s281 = sadd.s32 %s280, 1
      %p284 = scmp.eq.s32.totalorder %s21, 1
      %p285 = scmp.ne.s32.totalorder %s280, %s282
      %p286 = scmp.eq.s32.totalorder %s21, 0
      %p287 = por %p285, %p286
      %p288 = scmp.ne.s32.totalorder %s280, %s282
      %p289 = scmp.eq.s32.totalorder %s26, 1
      %p290 = por %p288, %p289
      %p291 = scmp.ne.s32.totalorder %s282, %s283
      %p292 = scmp.eq.s32.totalorder %s26, 0
      %p293 = por %p291, %p292
      %p294 = scmp.ne.s32.totalorder %s282, %s283
      %p295 = scmp.eq.s32.totalorder %s27, 1
      %p296 = por %p294, %p295
      %p298 = scmp.ne.s32.totalorder %s283, %s297
      %p299 = scmp.eq.s32.totalorder %s27, 0
      %p300 = por %p298, %p299
      %s301 = ssub.s32 %s21, %s28
      %p302 = scmp.eq.s32.totalorder %s301, 0
      %s304 = sadd.s32 %s303, 1
      %s305 = scalar_select %p302, %s303, %s304
      %p308 = pneg %p302
      %p309 = scmp.eq.s32.totalorder %s21, 1
      %p310 = por %p308, %p309
      %p311 = scmp.ne.s32.totalorder %s303, %s306
      %p312 = scmp.eq.s32.totalorder %s21, 0
      %p313 = por %p311, %p312
      %p314 = scmp.ne.s32.totalorder %s303, %s306
      %p315 = scmp.eq.s32.totalorder %s26, 1
      %p316 = por %p314, %p315
      %p317 = scmp.ne.s32.totalorder %s306, %s307
      %p318 = scmp.eq.s32.totalorder %s26, 0
      %p319 = por %p317, %p318
      %p320 = scmp.ne.s32.totalorder %s306, %s307
      %p321 = scmp.eq.s32.totalorder %s27, 1
      %p322 = por %p320, %p321
      %p324 = scmp.ne.s32.totalorder %s307, %s323
      %p325 = scmp.eq.s32.totalorder %s27, 0
      %p326 = por %p324, %p325
      %p327 = scmp.le.s32.totalorder 1, %s21
      %p328 = scmp.lt.s32.totalorder %s21, 3
      %p329 = pnand %p327, %p328
      %p330 = pneg %p329
      // Predicated region
      $region9: #{decoder_layer_forward.1} parent=5 // pred_check
        _
      $region10: #{decoder_layer_forward.1} parent=5 // pred_check_branch
        %332 = sbr.rel (%p329) target = $region12
      $region11: #{decoder_layer_forward.1} parent=5 // pred_region
        %s333 = ssub.s32 %s21, 1
        // Predicated region
        $region13: #{decoder_layer_forward.1} parent=11 // pred_check
          %p334 = pneg %p146
        $region14: #{decoder_layer_forward.1} parent=11 // pred_check_branch
          %336 = sbr.rel (%p334) target = $region16
        $region15: #{decoder_layer_forward.1} parent=11 // pred_region
          _
        $region16: #{decoder_layer_forward.1} parent=11 // pred_fallthru
          _
        // Predicated region
        $region17: #{decoder_layer_forward.1} parent=11 // pred_check
          %p337 = pneg %p167
        $region18: #{decoder_layer_forward.1} parent=11 // pred_check_branch
          %339 = sbr.rel (%p337) target = $region20
        $region19: #{decoder_layer_forward.1} parent=11 // pred_region
          _
        $region20: #{decoder_layer_forward.1} parent=11 // pred_fallthru
          _
        // Predicated region
        $region21: #{decoder_layer_forward.1} parent=11 // pred_check
          %p340 = pneg %p188
        $region22: #{decoder_layer_forward.1} parent=11 // pred_check_branch
          %342 = sbr.rel (%p340) target = $region24
        $region23: #{decoder_layer_forward.1} parent=11 // pred_region
          _
        $region24: #{decoder_layer_forward.1} parent=11 // pred_fallthru
          _
        // Predicated region
        $region25: #{decoder_layer_forward.1} parent=11 // pred_check
          %p343 = pneg %p209
        $region26: #{decoder_layer_forward.1} parent=11 // pred_check_branch
          %345 = sbr.rel (%p343) target = $region28
        $region27: #{decoder_layer_forward.1} parent=11 // pred_region
          _
        $region28: #{decoder_layer_forward.1} parent=11 // pred_fallthru
          _
        // Predicated region
        $region29: #{decoder_layer_forward.1} parent=11 // pred_check
          %p346 = pneg %p230
        $region30: #{decoder_layer_forward.1} parent=11 // pred_check_branch
          %348 = sbr.rel (%p346) target = $region32
        $region31: #{decoder_layer_forward.1} parent=11 // pred_region
          _
        $region32: #{decoder_layer_forward.1} parent=11 // pred_fallthru
          _
        // Predicated region
        $region33: #{decoder_layer_forward.1} parent=11 // pred_check
          %p349 = pneg %p251
        $region34: #{decoder_layer_forward.1} parent=11 // pred_check_branch
          %351 = sbr.rel (%p349) target = $region36
        $region35: #{decoder_layer_forward.1} parent=11 // pred_region
          _
        $region36: #{decoder_layer_forward.1} parent=11 // pred_fallthru
          _
        // Predicated region
        $region37: #{decoder_layer_forward.1} parent=11 // pred_check
          %p352 = pneg %p272
        $region38: #{decoder_layer_forward.1} parent=11 // pred_check_branch
          %354 = sbr.rel (%p352) target = $region40
        $region39: #{decoder_layer_forward.1} parent=11 // pred_region
          _
        $region40: #{decoder_layer_forward.1} parent=11 // pred_fallthru
          _
        // Predicated region
        $region41: #{decoder_layer_forward.1} parent=11 // pred_check
          %p355 = pneg %p293
        $region42: #{decoder_layer_forward.1} parent=11 // pred_check_branch
          %357 = sbr.rel (%p355) target = $region44
        $region43: #{decoder_layer_forward.1} parent=11 // pred_region
          _
        $region44: #{decoder_layer_forward.1} parent=11 // pred_fallthru
          _
      $region12: #{decoder_layer_forward.1} parent=5 // pred_fallthru
        _
      %p358 = scmp.lt.s32.totalorder %s21, 2
      // Predicated region
      $region45: #{decoder_layer_forward.1} parent=5 // pred_check
        %p359 = pneg %p358
      $region46: #{decoder_layer_forward.1} parent=5 // pred_check_branch
        %361 = sbr.rel (%p359) target = $region48
      $region47: #{decoder_layer_forward.1} parent=5 // pred_region
        // Predicated region
        $region49: #{decoder_layer_forward.1} parent=47 // pred_check
          %p362 = pneg %p41
        $region50: #{decoder_layer_forward.1} parent=47 // pred_check_branch
          %364 = sbr.rel (%p362) target = $region52
        $region51: #{decoder_layer_forward.1} parent=47 // pred_region
          %p365 = scmp.lt.s32.totalorder %s21, 1
          %s366 = scalar_select %p365, %s21, 1
          %s367 = smul.addr %s366, 8
          %s368 = scalar_lea.vmem %s0, %s367
        $region52: #{decoder_layer_forward.1} parent=47 // pred_fallthru
          _
        // Predicated region
        $region53: #{decoder_layer_forward.1} parent=47 // pred_check
          %p369 = pneg %p67
        $region54: #{decoder_layer_forward.1} parent=47 // pred_check_branch
          %371 = sbr.rel (%p369) target = $region56
        $region55: #{decoder_layer_forward.1} parent=47 // pred_region
          %p372 = scmp.lt.s32.totalorder %s21, 1
          %s373 = scalar_select %p372, %s21, 1
          %s374 = smul.addr %s373, 8
          %s375 = scalar_lea.vmem %s1, %s374
        $region56: #{decoder_layer_forward.1} parent=47 // pred_fallthru
          _
        // Predicated region
        $region57: #{decoder_layer_forward.1} parent=47 // pred_check
          %p376 = pneg %p93
        $region58: #{decoder_layer_forward.1} parent=47 // pred_check_branch
          %378 = sbr.rel (%p376) target = $region60
        $region59: #{decoder_layer_forward.1} parent=47 // pred_region
          %p379 = scmp.lt.s32.totalorder %s21, 1
          %s380 = scalar_select %p379, %s21, 1
          %s381 = scalar_lea.vmem %s2, %s380
        $region60: #{decoder_layer_forward.1} parent=47 // pred_fallthru
          _
        // Predicated region
        $region61: #{decoder_layer_forward.1} parent=47 // pred_check
          %p382 = pneg %p119
        $region62: #{decoder_layer_forward.1} parent=47 // pred_check_branch
          %384 = sbr.rel (%p382) target = $region64
        $region63: #{decoder_layer_forward.1} parent=47 // pred_region
          %p385 = scmp.lt.s32.totalorder %s21, 1
          %s386 = scalar_select %p385, %s21, 1
          %s387 = scalar_lea.vmem %s3, %s386
        $region64: #{decoder_layer_forward.1} parent=47 // pred_fallthru
          _
      $region48: #{decoder_layer_forward.1} parent=5 // pred_fallthru
        _
      %p388 = scmp.le.s32.totalorder 1, %s21
      %p389 = scmp.lt.s32.totalorder %s21, 3
      %p390 = pnand %p388, %p389
      %p391 = pneg %p390
      // Predicated region
      $region65: #{decoder_layer_forward.1} parent=5 // pred_check
        _
      $region66: #{decoder_layer_forward.1} parent=5 // pred_check_branch
        %393 = sbr.rel (%p390) target = $region68
      $region67: #{decoder_layer_forward.1} parent=5 // pred_region
        %s394 = ssub.s32 %s21, 1
        %p395 = scmp.lt.s32.totalorder %s26, 1
        %s396 = scalar_select %p395, %s26, 1
        %s397 = smul.addr %s396, 8
        %s398 = scalar_lea.vmem %s0, %s397
        %p399 = pneg %p47
        %p400 = pneg %p44
        %p401 = scmp.lt.s32.totalorder %s26, 1
        %s402 = scalar_select %p401, %s26, 1
        %s403 = smul.addr %s402, 8
        %s404 = scalar_lea.vmem %s1, %s403
        %p405 = pneg %p73
        %p406 = pneg %p70
        %p407 = scmp.lt.s32.totalorder %s26, 1
        %s408 = scalar_select %p407, %s26, 1
        %s409 = scalar_lea.vmem %s2, %s408
        %p410 = pneg %p99
        %p411 = pneg %p96
        %p412 = scmp.lt.s32.totalorder %s26, 1
        %s413 = scalar_select %p412, %s26, 1
        %s414 = scalar_lea.vmem %s3, %s413
        %p415 = pneg %p125
        %p416 = pneg %p122
        %p417 = pneg %p146
        %p418 = pneg %p143
        %p419 = pneg %p167
        %p420 = pneg %p164
        %p421 = pneg %p188
        %p422 = pneg %p185
        %p423 = pneg %p209
        %p424 = pneg %p206
        %p425 = pneg %p230
        %p426 = pneg %p227
        %p427 = pneg %p251
        %p428 = pneg %p248
        %p429 = pneg %p272
        %p430 = pneg %p269
        %p431 = pneg %p293
        %p432 = pneg %p290
        %p433 = pneg %p319
        %p434 = pneg %p316
        %s435 = sand.u32 %s306, 1
        %s436 = scalar_lea.sflag [#allocation3], %s435
        %s437 = sand.u32 %s306, 1
        %s438 = smul.addr %s437, 8
        %s439 = scalar_lea.vmem [#allocation2], %s438
        %p440 = scmp.lt.s32.totalorder %s26, 1
        %s441 = scalar_select %p440, %s26, 1
        %s442 = smul.addr %s441, 8
        %s443 = scalar_lea.vmem %s0, %s442
        %p444 = scmp.lt.s32.totalorder %s26, 1
        %s445 = scalar_select %p444, %s26, 1
        %s446 = smul.addr %s445, 8
        %s447 = scalar_lea.vmem %s1, %s446
        %p448 = scmp.lt.s32.totalorder %s26, 1
        %s449 = scalar_select %p448, %s26, 1
        %s450 = scalar_lea.vmem %s2, %s449
        %p451 = scmp.lt.s32.totalorder %s26, 1
        %s452 = scalar_select %p451, %s26, 1
        %s453 = scalar_lea.vmem %s3, %s452
        %v455 = vld [vmem:[%s443] sm:$0xff]
        %v456 = vld [vmem:[%s447] sm:$0xff]
        %v457 = vpack.c.bf16 %v455, %v455
        %v458 = vld [vmem:[%s4] sm:$0xff]
        %v459 = vld [vmem:[%s4 + $0x8] sm:$0xf]
        %v460 = vld [vmem:[%s4 + $0xc] sm:$0xff]
        %v461 = vld [vmem:[%s4 + $0x14] sm:$0xf]
        %v462 = vld [vmem:[%s4 + $0x18] sm:$0xff]
        %v463 = vld [vmem:[%s4 + $0x20] sm:$0xf]
        %v464 = vld [vmem:[%s4 + $0x24] sm:$0xff]
        %v465 = vld [vmem:[%s4 + $0x2c] sm:$0xf]
        %v466 = vld [vmem:[%s4 + $0x30] sm:$0xff]
        %v467 = vld [vmem:[%s4 + $0x38] sm:$0xf]
        %v468 = vld [vmem:[%s4 + $0x3c] sm:$0xff]
        %v469 = vld [vmem:[%s4 + $0x44] sm:$0xf]
        %v470 = vld [vmem:[%s4 + $0x48] sm:$0xff]
        %v471 = vld [vmem:[%s4 + $0x50] sm:$0xf]
        %v472 = vld [vmem:[%s4 + $0x54] sm:$0xff]
        %v473 = vld [vmem:[%s4 + $0x5c] sm:$0xf]
        %v474 = vld [vmem:[%s4 + $0x60] sm:$0xff]
        %v475 = vld [vmem:[%s4 + $0x68] sm:$0xf]
        %v476 = vld [vmem:[%s4 + $0x6c] sm:$0xff]
        %v477 = vld [vmem:[%s4 + $0x74] sm:$0xf]
        %v478 = vld [vmem:[%s4 + $0x78] sm:$0xff]
        %v479 = vld [vmem:[%s4 + $0x80] sm:$0xf]
        %v480 = vld [vmem:[%s4 + $0x84] sm:$0xff]
        %v481 = vld [vmem:[%s4 + $0x8c] sm:$0xf]
        %v482 = vld [vmem:[%s4 + $0x90] sm:$0xff]
        %v483 = vld [vmem:[%s4 + $0x98] sm:$0xf]
        %v484 = vld [vmem:[%s4 + $0x9c] sm:$0xff]
        %v485 = vld [vmem:[%s4 + $0xa4] sm:$0xf]
        %v486 = vld [vmem:[%s4 + $0xa8] sm:$0xff]
        %v487 = vld [vmem:[%s4 + $0xb0] sm:$0xf]
        %v488 = vld [vmem:[%s4 + $0xb4] sm:$0xff]
        %v489 = vld [vmem:[%s4 + $0xbc] sm:$0xf]
        %v490 = vld [vmem:[%s11] ss:$8 sm:$0x7]
        %v492 = vlaneseq
        %v493 = vshrl.u32 %v492, 7
        %v494 = vsub.s32 0, %v493
        %v495 = vrot.slane %v490, %v494
        %v496 = vlaneseq
        %v497 = vshrl.u32 %v496, 7
        %v498 = vsub.s32 1, %v497
        %v499 = vrot.slane %v490, %v498
        %v500 = vlaneseq
        %v501 = vshrl.u32 %v500, 7
        %v502 = vsub.s32 2, %v501
        %v503 = vrot.slane %v490, %v502
        %v539 = vunpack.c.l.b16 %v458
        %v540 = vunpack.c.h.b16 %v458
        %v541 = vunpack.c.l.b16 %v459
        %v542 = vunpack.c.l.b16 %v460
        %v543 = vunpack.c.h.b16 %v460
        %v544 = vunpack.c.l.b16 %v461
        %v545 = vunpack.c.l.b16 %v462
        %v546 = vunpack.c.h.b16 %v462
        %v547 = vunpack.c.l.b16 %v463
        %v548 = vunpack.c.l.b16 %v464
        %v549 = vunpack.c.h.b16 %v464
        %v550 = vunpack.c.l.b16 %v465
        %v551 = vunpack.c.l.b16 %v466
        %v552 = vunpack.c.h.b16 %v466
        %v553 = vunpack.c.l.b16 %v467
        %v554 = vunpack.c.l.b16 %v468
        %v555 = vunpack.c.h.b16 %v468
        %v556 = vunpack.c.l.b16 %v469
        %v557 = vunpack.c.l.b16 %v470
        %v558 = vunpack.c.h.b16 %v470
        %v559 = vunpack.c.l.b16 %v471
        %v560 = vunpack.c.l.b16 %v472
        %v561 = vunpack.c.h.b16 %v472
        %v562 = vunpack.c.l.b16 %v473
        %v563 = vunpack.c.l.b16 %v474
        %v564 = vunpack.c.h.b16 %v474
        %v565 = vunpack.c.l.b16 %v475
        %v566 = vunpack.c.l.b16 %v476
        %v567 = vunpack.c.h.b16 %v476
        %v568 = vunpack.c.l.b16 %v477
        %v569 = vunpack.c.l.b16 %v478
        %v570 = vunpack.c.h.b16 %v478
        %v571 = vunpack.c.l.b16 %v479
        %v572 = vunpack.c.l.b16 %v480
        %v573 = vunpack.c.h.b16 %v480
        %v574 = vunpack.c.l.b16 %v481
        %v575 = vunpack.c.l.b16 %v482
        %v576 = vunpack.c.h.b16 %v482
        %v577 = vunpack.c.l.b16 %v483
        %v578 = vunpack.c.l.b16 %v484
        %v579 = vunpack.c.h.b16 %v484
        %v580 = vunpack.c.l.b16 %v485
        %v581 = vunpack.c.l.b16 %v486
        %v582 = vunpack.c.h.b16 %v486
        %v583 = vunpack.c.l.b16 %v487
        %v584 = vunpack.c.l.b16 %v488
        %v585 = vunpack.c.h.b16 %v488
        %v586 = vunpack.c.l.b16 %v489
        %v587 = vpack.c.b16 %v542, %v539
        %v588 = vpack.c.b16 %v543, %v540
        %v589 = vpack.c.b16 %v544, %v541
        %v590 = vpack.c.b16 %v548, %v545
        %v591 = vpack.c.b16 %v549, %v546
        %v592 = vpack.c.b16 %v550, %v547
        %v593 = vpack.c.b16 %v554, %v551
        %v594 = vpack.c.b16 %v555, %v552
        %v595 = vpack.c.b16 %v556, %v553
        %v596 = vpack.c.b16 %v560, %v557
        %v597 = vpack.c.b16 %v561, %v558
        %v598 = vpack.c.b16 %v562, %v559
        %v599 = vpack.c.b16 %v566, %v563
        %v600 = vpack.c.b16 %v567, %v564
        %v601 = vpack.c.b16 %v568, %v565
        %v602 = vpack.c.b16 %v572, %v569
        %v603 = vpack.c.b16 %v573, %v570
        %v604 = vpack.c.b16 %v574, %v571
        %v605 = vpack.c.b16 %v578, %v575
        %v606 = vpack.c.b16 %v579, %v576
        %v607 = vpack.c.b16 %v580, %v577
        %v608 = vpack.c.b16 %v584, %v581
        %v609 = vpack.c.b16 %v585, %v582
        %v610 = vpack.c.b16 %v586, %v583
        %635 = vmatprep.subr.bf16.mxu0 %v609
        %636 = vmatpush1.bf16.msra.mxu0 %v608
        %637 = vmatprep.subr.bf16.mxu0 %v606
        %638 = vmatpush1.bf16.msra.mxu0 %v605
        %639 = vmatprep.subr.bf16.mxu0 %v603
        %640 = vmatpush1.bf16.msra.mxu0 %v602
        %641 = vmatprep.subr.bf16.mxu0 %v600
        %642 = vmatpush1.bf16.msra.mxu0 %v599
        %643 = vmatprep.subr.bf16.mxu0 %v597
        %644 = vmatpush1.bf16.msra.mxu0 %v596
        %645 = vmatprep.subr.bf16.mxu0 %v594
        %646 = vmatpush1.bf16.msra.mxu0 %v593
        %647 = vmatprep.subr.bf16.mxu0 %v591
        %648 = vmatpush1.bf16.msra.mxu0 %v590
        %649 = vmatprep.subr.bf16.mxu0 %v588
        %650 = vmatpush1.bf16.msra.mxu0 %v587
        %651 = vmatprep.subr.bf16.mxu0 0
        %652 = vmatpush2.bf16.msra.mxu0 0
        %653 = vmatprep.subr.bf16.mxu0 0
        %654 = vmatpush2.bf16.msra.mxu0 0
        %655 = vmatprep.subr.bf16.mxu0 0
        %656 = vmatpush2.bf16.msra.mxu0 0
        %657 = vmatprep.subr.bf16.mxu0 0
        %658 = vmatpush2.bf16.msra.mxu0 0
        %659 = vmatprep.subr.bf16.mxu0 0
        %660 = vmatpush2.bf16.msra.mxu0 0
        %661 = vmatprep.subr.bf16.mxu0 0
        %662 = vmatpush2.bf16.msra.mxu0 0
        %663 = vmatprep.subr.bf16.mxu0 0
        %664 = vmatpush2.bf16.msra.mxu0 0
        %665 = vmatprep.subr.bf16.mxu0 0
        %666 = vmatpush2.bf16.msra.mxu0 0
        %667 = vmatprep.mubr.bf16.mxu0 0
        %668 = vmatmul.mubr.bf16.gmra.mxu0 %v457
        %v669 = vpop.f32.mrf.mxu0
        %v670 = vadd.f32 %v495, %v669
        %v671 = vpop.f32.mrf.mxu0
        %v672 = vadd.f32 %v499, %v671
        %v673 = vpop.f32.mrf.mxu0
        %v674 = vpop.f32.mrf.mxu0
        %675 = vdwg.mxu0
        %676 = vmatprep.subr.bf16.mxu0 0
        %677 = vmatpush1.bf16.msra.mxu0 %v610
        %678 = vmatprep.subr.bf16.mxu0 0
        %679 = vmatpush1.bf16.msra.mxu0 %v607
        %680 = vmatprep.subr.bf16.mxu0 0
        %681 = vmatpush1.bf16.msra.mxu0 %v604
        %682 = vmatprep.subr.bf16.mxu0 0
        %683 = vmatpush1.bf16.msra.mxu0 %v601
        %684 = vmatprep.subr.bf16.mxu0 0
        %685 = vmatpush1.bf16.msra.mxu0 %v598
        %686 = vmatprep.subr.bf16.mxu0 0
        %687 = vmatpush1.bf16.msra.mxu0 %v595
        %688 = vmatprep.subr.bf16.mxu0 0
        %689 = vmatpush1.bf16.msra.mxu0 %v592
        %690 = vmatprep.subr.bf16.mxu0 0
        %691 = vmatpush1.bf16.msra.mxu0 %v589
        %692 = vmatprep.subr.bf16.mxu0 0
        %693 = vmatpush2.bf16.msra.mxu0 0
        %694 = vmatprep.subr.bf16.mxu0 0
        %695 = vmatpush2.bf16.msra.mxu0 0
        %696 = vmatprep.subr.bf16.mxu0 0
        %697 = vmatpush2.bf16.msra.mxu0 0
        %698 = vmatprep.subr.bf16.mxu0 0
        %699 = vmatpush2.bf16.msra.mxu0 0
        %700 = vmatprep.subr.bf16.mxu0 0
        %701 = vmatpush2.bf16.msra.mxu0 0
        %702 = vmatprep.subr.bf16.mxu0 0
        %703 = vmatpush2.bf16.msra.mxu0 0
        %704 = vmatprep.subr.bf16.mxu0 0
        %705 = vmatpush2.bf16.msra.mxu0 0
        %706 = vmatprep.subr.bf16.mxu0 0
        %707 = vmatpush2.bf16.msra.mxu0 0
        %708 = vmatprep.mubr.bf16.mxu0 0
        %709 = vmatmul.mubr.bf16.gmra.mxu0 %v457
        %v710 = vpop.f32.mrf.mxu0
        %v711 = vadd.f32 %v503, %v710
        %v712 = vpop.f32.mrf.mxu0
        %v713 = vpop.f32.mrf.mxu0
        %v714 = vpop.f32.mrf.mxu0
        %715 = vdwg.mxu0
        %v716 = vld [vmem:[%s450] sm:$0x1]
        %v717 = vld [vmem:[%s11 + $0x1] ss:$0 sm:$0xff]
        %719 = vrot.lane.b32.xlu0 %v670, 96
        %v720 = vpop.permute.xlu0 %719
        %722 = vrot.lane.b32.xlu0 %v670, 64
        %v723 = vpop.permute.xlu0 %722
        %725 = vrot.lane.b32.xlu0 %v670, 32
        %v726 = vpop.permute.xlu0 %725
        %v728 = vpack.c.bf16 %v670, %v670
        %v729 = vpack.c.bf16 %v720, %v720
        %v730 = vpack.c.bf16 %v723, %v723
        %v731 = vpack.c.bf16 %v726, %v726
        %733 = vrot.lane.b32.xlu0 %v672, 96
        %v734 = vpop.permute.xlu0 %733
        %736 = vrot.lane.b32.xlu0 %v672, 64
        %v737 = vpop.permute.xlu0 %736
        %739 = vrot.lane.b32.xlu0 %v672, 32
        %v740 = vpop.permute.xlu0 %739
        %v742 = vpack.c.bf16 %v672, %v672
        %v743 = vpack.c.bf16 %v734, %v734
        %v744 = vpack.c.bf16 %v737, %v737
        %v745 = vpack.c.bf16 %v740, %v740
        %747 = vrot.lane.b32.xlu0 %v711, 96
        %v748 = vpop.permute.xlu0 %747
        %750 = vrot.lane.b32.xlu0 %v711, 64
        %v751 = vpop.permute.xlu0 %750
        %753 = vrot.lane.b32.xlu0 %v711, 32
        %v754 = vpop.permute.xlu0 %753
        %v756 = vpack.c.bf16 %v711, %v711
        %v757 = vpack.c.bf16 %v748, %v748
        %v758 = vpack.c.bf16 %v751, %v751
        %v759 = vpack.c.bf16 %v754, %v754
        %vm760 = vcmask 261120
        %v762 = vsel %vm760, %v728, 0
        %v765 = vsel %vm760, %v742, 0
        %767 = vmatprep.subr.bf16.mxu0 0
        %768 = vmatpush1.bf16.xpose.msra.mxu0 0
        %769 = vmatprep.subr.bf16.mxu0 0
        %770 = vmatpush1.bf16.xpose.msra.mxu0 0
        %771 = vmatprep.subr.bf16.mxu0 0
        %772 = vmatpush1.bf16.xpose.msra.mxu0 0
        %773 = vmatprep.subr.bf16.mxu0 0
        %774 = vmatpush1.bf16.xpose.msra.mxu0 0
        %775 = vmatprep.subr.bf16.mxu0 0
        %776 = vmatpush1.bf16.xpose.msra.mxu0 0
        %777 = vmatprep.subr.bf16.mxu0 0
        %778 = vmatpush1.bf16.xpose.msra.mxu0 0
        %779 = vmatprep.subr.bf16.mxu0 0
        %780 = vmatpush1.bf16.xpose.msra.mxu0 0
        %781 = vmatprep.subr.bf16.mxu0 0
        %782 = vmatpush1.bf16.xpose.msra.mxu0 %v765
        %783 = vmatprep.subr.bf16.mxu0 0
        %784 = vmatpush2.bf16.xpose.msra.mxu0 0
        %785 = vmatprep.subr.bf16.mxu0 0
        %786 = vmatpush2.bf16.xpose.msra.mxu0 0
        %787 = vmatprep.subr.bf16.mxu0 0
        %788 = vmatpush2.bf16.xpose.msra.mxu0 0
        %789 = vmatprep.subr.bf16.mxu0 0
        %790 = vmatpush2.bf16.xpose.msra.mxu0 0
        %791 = vmatprep.subr.bf16.mxu0 0
        %792 = vmatpush2.bf16.xpose.msra.mxu0 0
        %793 = vmatprep.subr.bf16.mxu0 0
        %794 = vmatpush2.bf16.xpose.msra.mxu0 0
        %795 = vmatprep.subr.bf16.mxu0 0
        %796 = vmatpush2.bf16.xpose.msra.mxu0 0
        %797 = vmatprep.subr.bf16.mxu0 0
        %798 = vmatpush2.bf16.xpose.msra.mxu0 0
        %799 = vmatprep.mubr.bf16.mxu0 0
        %800 = vmatmul.mubr.bf16.gmra.mxu0 %v762
        %v801 = vpop.f32.mrf.mxu0
        %v802 = vadd.f32 0.0, %v801
        %v803 = vpop.f32.mrf.mxu0
        %v804 = vpop.f32.mrf.mxu0
        %v805 = vpop.f32.mrf.mxu0
        %806 = vdwg.mxu0
        %v808 = vsel %vm760, %v729, 0
        %v811 = vsel %vm760, %v743, 0
        %813 = vmatprep.subr.bf16.mxu0 0
        %814 = vmatpush1.bf16.xpose.msra.mxu0 0
        %815 = vmatprep.subr.bf16.mxu0 0
        %816 = vmatpush1.bf16.xpose.msra.mxu0 0
        %817 = vmatprep.subr.bf16.mxu0 0
        %818 = vmatpush1.bf16.xpose.msra.mxu0 0
        %819 = vmatprep.subr.bf16.mxu0 0
        %820 = vmatpush1.bf16.xpose.msra.mxu0 0
        %821 = vmatprep.subr.bf16.mxu0 0
        %822 = vmatpush1.bf16.xpose.msra.mxu0 0
        %823 = vmatprep.subr.bf16.mxu0 0
        %824 = vmatpush1.bf16.xpose.msra.mxu0 0
        %825 = vmatprep.subr.bf16.mxu0 0
        %826 = vmatpush1.bf16.xpose.msra.mxu0 0
        %827 = vmatprep.subr.bf16.mxu0 0
        %828 = vmatpush1.bf16.xpose.msra.mxu0 %v811
        %829 = vmatprep.subr.bf16.mxu0 0
        %830 = vmatpush2.bf16.xpose.msra.mxu0 0
        %831 = vmatprep.subr.bf16.mxu0 0
        %832 = vmatpush2.bf16.xpose.msra.mxu0 0
        %833 = vmatprep.subr.bf16.mxu0 0
        %834 = vmatpush2.bf16.xpose.msra.mxu0 0
        %835 = vmatprep.subr.bf16.mxu0 0
        %836 = vmatpush2.bf16.xpose.msra.mxu0 0
        %837 = vmatprep.subr.bf16.mxu0 0
        %838 = vmatpush2.bf16.xpose.msra.mxu0 0
        %839 = vmatprep.subr.bf16.mxu0 0
        %840 = vmatpush2.bf16.xpose.msra.mxu0 0
        %841 = vmatprep.subr.bf16.mxu0 0
        %842 = vmatpush2.bf16.xpose.msra.mxu0 0
        %843 = vmatprep.subr.bf16.mxu0 0
        %844 = vmatpush2.bf16.xpose.msra.mxu0 0
        %845 = vmatprep.mubr.bf16.mxu0 0
        %846 = vmatmul.mubr.bf16.gmra.mxu0 %v808
        %v847 = vpop.f32.mrf.mxu0
        %v848 = vadd.f32 0.0, %v847
        %v849 = vpop.f32.mrf.mxu0
        %v850 = vpop.f32.mrf.mxu0
        %v851 = vpop.f32.mrf.mxu0
        %852 = vdwg.mxu0
        %v854 = vsel %vm760, %v730, 0
        %v857 = vsel %vm760, %v744, 0
        %859 = vmatprep.subr.bf16.mxu0 0
        %860 = vmatpush1.bf16.xpose.msra.mxu0 0
        %861 = vmatprep.subr.bf16.mxu0 0
        %862 = vmatpush1.bf16.xpose.msra.mxu0 0
        %863 = vmatprep.subr.bf16.mxu0 0
        %864 = vmatpush1.bf16.xpose.msra.mxu0 0
        %865 = vmatprep.subr.bf16.mxu0 0
        %866 = vmatpush1.bf16.xpose.msra.mxu0 0
        %867 = vmatprep.subr.bf16.mxu0 0
        %868 = vmatpush1.bf16.xpose.msra.mxu0 0
        %869 = vmatprep.subr.bf16.mxu0 0
        %870 = vmatpush1.bf16.xpose.msra.mxu0 0
        %871 = vmatprep.subr.bf16.mxu0 0
        %872 = vmatpush1.bf16.xpose.msra.mxu0 0
        %873 = vmatprep.subr.bf16.mxu0 0
        %874 = vmatpush1.bf16.xpose.msra.mxu0 %v857
        %875 = vmatprep.subr.bf16.mxu0 0
        %876 = vmatpush2.bf16.xpose.msra.mxu0 0
        %877 = vmatprep.subr.bf16.mxu0 0
        %878 = vmatpush2.bf16.xpose.msra.mxu0 0
        %879 = vmatprep.subr.bf16.mxu0 0
        %880 = vmatpush2.bf16.xpose.msra.mxu0 0
        %881 = vmatprep.subr.bf16.mxu0 0
        %882 = vmatpush2.bf16.xpose.msra.mxu0 0
        %883 = vmatprep.subr.bf16.mxu0 0
        %884 = vmatpush2.bf16.xpose.msra.mxu0 0
        %885 = vmatprep.subr.bf16.mxu0 0
        %886 = vmatpush2.bf16.xpose.msra.mxu0 0
        %887 = vmatprep.subr.bf16.mxu0 0
        %888 = vmatpush2.bf16.xpose.msra.mxu0 0
        %889 = vmatprep.subr.bf16.mxu0 0
        %890 = vmatpush2.bf16.xpose.msra.mxu0 0
        %891 = vmatprep.mubr.bf16.mxu0 0
        %892 = vmatmul.mubr.bf16.gmra.mxu0 %v854
        %v893 = vpop.f32.mrf.mxu0
        %v894 = vadd.f32 0.0, %v893
        %v895 = vpop.f32.mrf.mxu0
        %v896 = vpop.f32.mrf.mxu0
        %v897 = vpop.f32.mrf.mxu0
        %898 = vdwg.mxu0
        %v900 = vsel %vm760, %v731, 0
        %v903 = vsel %vm760, %v745, 0
        %905 = vmatprep.subr.bf16.mxu0 0
        %906 = vmatpush1.bf16.xpose.msra.mxu0 0
        %907 = vmatprep.subr.bf16.mxu0 0
        %908 = vmatpush1.bf16.xpose.msra.mxu0 0
        %909 = vmatprep.subr.bf16.mxu0 0
        %910 = vmatpush1.bf16.xpose.msra.mxu0 0
        %911 = vmatprep.subr.bf16.mxu0 0
        %912 = vmatpush1.bf16.xpose.msra.mxu0 0
        %913 = vmatprep.subr.bf16.mxu0 0
        %914 = vmatpush1.bf16.xpose.msra.mxu0 0
        %915 = vmatprep.subr.bf16.mxu0 0
        %916 = vmatpush1.bf16.xpose.msra.mxu0 0
        %917 = vmatprep.subr.bf16.mxu0 0
        %918 = vmatpush1.bf16.xpose.msra.mxu0 0
        %919 = vmatprep.subr.bf16.mxu0 0
        %920 = vmatpush1.bf16.xpose.msra.mxu0 %v903
        %921 = vmatprep.subr.bf16.mxu0 0
        %922 = vmatpush2.bf16.xpose.msra.mxu0 0
        %923 = vmatprep.subr.bf16.mxu0 0
        %924 = vmatpush2.bf16.xpose.msra.mxu0 0
        %925 = vmatprep.subr.bf16.mxu0 0
        %926 = vmatpush2.bf16.xpose.msra.mxu0 0
        %927 = vmatprep.subr.bf16.mxu0 0
        %928 = vmatpush2.bf16.xpose.msra.mxu0 0
        %929 = vmatprep.subr.bf16.mxu0 0
        %930 = vmatpush2.bf16.xpose.msra.mxu0 0
        %931 = vmatprep.subr.bf16.mxu0 0
        %932 = vmatpush2.bf16.xpose.msra.mxu0 0
        %933 = vmatprep.subr.bf16.mxu0 0
        %934 = vmatpush2.bf16.xpose.msra.mxu0 0
        %935 = vmatprep.subr.bf16.mxu0 0
        %936 = vmatpush2.bf16.xpose.msra.mxu0 0
        %937 = vmatprep.mubr.bf16.mxu0 0
        %938 = vmatmul.mubr.bf16.gmra.mxu0 %v900
        %v939 = vpop.f32.mrf.mxu0
        %v940 = vadd.f32 0.0, %v939
        %v941 = vpop.f32.mrf.mxu0
        %v942 = vpop.f32.mrf.mxu0
        %v943 = vpop.f32.mrf.mxu0
        %944 = vdwg.mxu0
        %v945 = vmul.f32 %v802, 0.17677669
        %v946 = vmul.f32 %v848, 0.17677669
        %v947 = vmul.f32 %v894, 0.17677669
        %v948 = vmul.f32 %v940, 0.17677669
        %v950 = vlaneseq
        %v951 = vshrl.u32 %v950, 7
        %v952 = vsub.s32 0, %v951
        %v953 = vrot.slane %v716, %v952
        %v955 = vadd.f32 %v945, %v953
        %v956 = vadd.f32 %v946, %v953
        %v957 = vadd.f32 %v947, %v953
        %v958 = vadd.f32 %v948, %v953
        %vm959 = vcmask 64512
        %v960 = vsel %vm959, %v955, -inf
        %961 = vmax.xlane.f32.xlu0 %v960
        %v962 = vpop.xlane.xlu0 %961
        %v963 = vsel %vm959, %v956, -inf
        %964 = vmax.xlane.f32.xlu0 %v963
        %v965 = vpop.xlane.xlu0 %964
        %v966 = vsel %vm959, %v957, -inf
        %967 = vmax.xlane.f32.xlu0 %v966
        %v968 = vpop.xlane.xlu0 %967
        %v969 = vsel %vm959, %v958, -inf
        %970 = vmax.xlane.f32.xlu0 %v969
        %v971 = vpop.xlane.xlu0 %970
        %v972 = vsub.f32 %v955, %v962
        %v973 = vsub.f32 %v956, %v965
        %v974 = vsub.f32 %v957, %v968
        %v975 = vsub.f32 %v958, %v971
        %v976 = vmul.f32 %v972, 1.442695
        %v977 = vpow.pop %v976
        %v978 = vmul.f32 %v973, 1.442695
        %v979 = vpow.pop %v978
        %v980 = vmul.f32 %v974, 1.442695
        %v981 = vpow.pop %v980
        %v982 = vmul.f32 %v975, 1.442695
        %v983 = vpow.pop %v982
        %v984 = vsel %vm959, %v977, 0.0
        %985 = vadd.xlane.f32.xlu0 %v984
        %v986 = vpop.xlane.xlu0 %985
        %v987 = vsel %vm959, %v979, 0.0
        %988 = vadd.xlane.f32.xlu0 %v987
        %v989 = vpop.xlane.xlu0 %988
        %v990 = vsel %vm959, %v981, 0.0
        %991 = vadd.xlane.f32.xlu0 %v990
        %v992 = vpop.xlane.xlu0 %991
        %v993 = vsel %vm959, %v983, 0.0
        %994 = vadd.xlane.f32.xlu0 %v993
        %v995 = vpop.xlane.xlu0 %994
        %v996 = vrcp.pop %v986
        %v997 = vrcp.pop %v989
        %v998 = vrcp.pop %v992
        %v999 = vrcp.pop %v995
        %v1000 = vmul.f32 %v977, %v996
        %v1001 = vmul.f32 %v979, %v997
        %v1002 = vmul.f32 %v981, %v998
        %v1003 = vmul.f32 %v983, %v999
        %v1004 = vpack.c.bf16 %v1000, %v1000
        %v1005 = vpack.c.bf16 %v1001, %v1001
        %v1006 = vpack.c.bf16 %v1002, %v1002
        %v1007 = vpack.c.bf16 %v1003, %v1003
        %v1009 = vsel %vm959, %v1004, 0
        %vm1011 = vcmask 1043456
        %v1013 = vsel %vm1011, %v756, 0
        %1015 = vmatprep.subr.bf16.mxu0 0
        %1016 = vmatpush1.bf16.msra.mxu0 0
        %1017 = vmatprep.subr.bf16.mxu0 0
        %1018 = vmatpush1.bf16.msra.mxu0 0
        %1019 = vmatprep.subr.bf16.mxu0 0
        %1020 = vmatpush1.bf16.msra.mxu0 0
        %1021 = vmatprep.subr.bf16.mxu0 0
        %1022 = vmatpush1.bf16.msra.mxu0 0
        %1023 = vmatprep.subr.bf16.mxu0 0
        %1024 = vmatpush1.bf16.msra.mxu0 0
        %1025 = vmatprep.subr.bf16.mxu0 0
        %1026 = vmatpush1.bf16.msra.mxu0 0
        %1027 = vmatprep.subr.bf16.mxu0 0
        %1028 = vmatpush1.bf16.msra.mxu0 0
        %1029 = vmatprep.subr.bf16.mxu0 0
        %1030 = vmatpush1.bf16.msra.mxu0 %v1013
        %1031 = vmatprep.subr.bf16.mxu0 0
        %1032 = vmatpush2.bf16.msra.mxu0 0
        %1033 = vmatprep.subr.bf16.mxu0 0
        %1034 = vmatpush2.bf16.msra.mxu0 0
        %1035 = vmatprep.subr.bf16.mxu0 0
        %1036 = vmatpush2.bf16.msra.mxu0 0
        %1037 = vmatprep.subr.bf16.mxu0 0
        %1038 = vmatpush2.bf16.msra.mxu0 0
        %1039 = vmatprep.subr.bf16.mxu0 0
        %1040 = vmatpush2.bf16.msra.mxu0 0
        %1041 = vmatprep.subr.bf16.mxu0 0
        %1042 = vmatpush2.bf16.msra.mxu0 0
        %1043 = vmatprep.subr.bf16.mxu0 0
        %1044 = vmatpush2.bf16.msra.mxu0 0
        %1045 = vmatprep.subr.bf16.mxu0 0
        %1046 = vmatpush2.bf16.msra.mxu0 0
        %1047 = vmatprep.mubr.bf16.mxu0 0
        %1048 = vmatmul.mubr.bf16.gmra.mxu0 %v1009
        %v1049 = vpop.f32.mrf.mxu0
        %v1050 = vadd.f32 0.0, %v1049
        %v1051 = vpop.f32.mrf.mxu0
        %v1052 = vpop.f32.mrf.mxu0
        %v1053 = vpop.f32.mrf.mxu0
        %1054 = vdwg.mxu0
        %v1056 = vsel %vm959, %v1005, 0
        %v1059 = vsel %vm1011, %v757, 0
        %1061 = vmatprep.subr.bf16.mxu0 0
        %1062 = vmatpush1.bf16.msra.mxu0 0
        %1063 = vmatprep.subr.bf16.mxu0 0
        %1064 = vmatpush1.bf16.msra.mxu0 0
        %1065 = vmatprep.subr.bf16.mxu0 0
        %1066 = vmatpush1.bf16.msra.mxu0 0
        %1067 = vmatprep.subr.bf16.mxu0 0
        %1068 = vmatpush1.bf16.msra.mxu0 0
        %1069 = vmatprep.subr.bf16.mxu0 0
        %1070 = vmatpush1.bf16.msra.mxu0 0
        %1071 = vmatprep.subr.bf16.mxu0 0
        %1072 = vmatpush1.bf16.msra.mxu0 0
        %1073 = vmatprep.subr.bf16.mxu0 0
        %1074 = vmatpush1.bf16.msra.mxu0 0
        %1075 = vmatprep.subr.bf16.mxu0 0
        %1076 = vmatpush1.bf16.msra.mxu0 %v1059
        %1077 = vmatprep.subr.bf16.mxu0 0
        %1078 = vmatpush2.bf16.msra.mxu0 0
        %1079 = vmatprep.subr.bf16.mxu0 0
        %1080 = vmatpush2.bf16.msra.mxu0 0
        %1081 = vmatprep.subr.bf16.mxu0 0
        %1082 = vmatpush2.bf16.msra.mxu0 0
        %1083 = vmatprep.subr.bf16.mxu0 0
        %1084 = vmatpush2.bf16.msra.mxu0 0
        %1085 = vmatprep.subr.bf16.mxu0 0
        %1086 = vmatpush2.bf16.msra.mxu0 0
        %1087 = vmatprep.subr.bf16.mxu0 0
        %1088 = vmatpush2.bf16.msra.mxu0 0
        %1089 = vmatprep.subr.bf16.mxu0 0
        %1090 = vmatpush2.bf16.msra.mxu0 0
        %1091 = vmatprep.subr.bf16.mxu0 0
        %1092 = vmatpush2.bf16.msra.mxu0 0
        %1093 = vmatprep.mubr.bf16.mxu0 0
        %1094 = vmatmul.mubr.bf16.gmra.mxu0 %v1056
        %v1095 = vpop.f32.mrf.mxu0
        %v1096 = vadd.f32 0.0, %v1095
        %v1097 = vpop.f32.mrf.mxu0
        %v1098 = vpop.f32.mrf.mxu0
        %v1099 = vpop.f32.mrf.mxu0
        %1100 = vdwg.mxu0
        %v1102 = vsel %vm959, %v1006, 0
        %v1105 = vsel %vm1011, %v758, 0
        %1107 = vmatprep.subr.bf16.mxu0 0
        %1108 = vmatpush1.bf16.msra.mxu0 0
        %1109 = vmatprep.subr.bf16.mxu0 0
        %1110 = vmatpush1.bf16.msra.mxu0 0
        %1111 = vmatprep.subr.bf16.mxu0 0
        %1112 = vmatpush1.bf16.msra.mxu0 0
        %1113 = vmatprep.subr.bf16.mxu0 0
        %1114 = vmatpush1.bf16.msra.mxu0 0
        %1115 = vmatprep.subr.bf16.mxu0 0
        %1116 = vmatpush1.bf16.msra.mxu0 0
        %1117 = vmatprep.subr.bf16.mxu0 0
        %1118 = vmatpush1.bf16.msra.mxu0 0
        %1119 = vmatprep.subr.bf16.mxu0 0
        %1120 = vmatpush1.bf16.msra.mxu0 0
        %1121 = vmatprep.subr.bf16.mxu0 0
        %1122 = vmatpush1.bf16.msra.mxu0 %v1105
        %1123 = vmatprep.subr.bf16.mxu0 0
        %1124 = vmatpush2.bf16.msra.mxu0 0
        %1125 = vmatprep.subr.bf16.mxu0 0
        %1126 = vmatpush2.bf16.msra.mxu0 0
        %1127 = vmatprep.subr.bf16.mxu0 0
        %1128 = vmatpush2.bf16.msra.mxu0 0
        %1129 = vmatprep.subr.bf16.mxu0 0
        %1130 = vmatpush2.bf16.msra.mxu0 0
        %1131 = vmatprep.subr.bf16.mxu0 0
        %1132 = vmatpush2.bf16.msra.mxu0 0
        %1133 = vmatprep.subr.bf16.mxu0 0
        %1134 = vmatpush2.bf16.msra.mxu0 0
        %1135 = vmatprep.subr.bf16.mxu0 0
        %1136 = vmatpush2.bf16.msra.mxu0 0
        %1137 = vmatprep.subr.bf16.mxu0 0
        %1138 = vmatpush2.bf16.msra.mxu0 0
        %1139 = vmatprep.mubr.bf16.mxu0 0
        %1140 = vmatmul.mubr.bf16.gmra.mxu0 %v1102
        %v1141 = vpop.f32.mrf.mxu0
        %v1142 = vadd.f32 0.0, %v1141
        %v1143 = vpop.f32.mrf.mxu0
        %v1144 = vpop.f32.mrf.mxu0
        %v1145 = vpop.f32.mrf.mxu0
        %1146 = vdwg.mxu0
        %v1148 = vsel %vm959, %v1007, 0
        %v1151 = vsel %vm1011, %v759, 0
        %1153 = vmatprep.subr.bf16.mxu0 0
        %1154 = vmatpush1.bf16.msra.mxu0 0
        %1155 = vmatprep.subr.bf16.mxu0 0
        %1156 = vmatpush1.bf16.msra.mxu0 0
        %1157 = vmatprep.subr.bf16.mxu0 0
        %1158 = vmatpush1.bf16.msra.mxu0 0
        %1159 = vmatprep.subr.bf16.mxu0 0
        %1160 = vmatpush1.bf16.msra.mxu0 0
        %1161 = vmatprep.subr.bf16.mxu0 0
        %1162 = vmatpush1.bf16.msra.mxu0 0
        %1163 = vmatprep.subr.bf16.mxu0 0
        %1164 = vmatpush1.bf16.msra.mxu0 0
        %1165 = vmatprep.subr.bf16.mxu0 0
        %1166 = vmatpush1.bf16.msra.mxu0 0
        %1167 = vmatprep.subr.bf16.mxu0 0
        %1168 = vmatpush1.bf16.msra.mxu0 %v1151
        %1169 = vmatprep.subr.bf16.mxu0 0
        %1170 = vmatpush2.bf16.msra.mxu0 0
        %1171 = vmatprep.subr.bf16.mxu0 0
        %1172 = vmatpush2.bf16.msra.mxu0 0
        %1173 = vmatprep.subr.bf16.mxu0 0
        %1174 = vmatpush2.bf16.msra.mxu0 0
        %1175 = vmatprep.subr.bf16.mxu0 0
        %1176 = vmatpush2.bf16.msra.mxu0 0
        %1177 = vmatprep.subr.bf16.mxu0 0
        %1178 = vmatpush2.bf16.msra.mxu0 0
        %1179 = vmatprep.subr.bf16.mxu0 0
        %1180 = vmatpush2.bf16.msra.mxu0 0
        %1181 = vmatprep.subr.bf16.mxu0 0
        %1182 = vmatpush2.bf16.msra.mxu0 0
        %1183 = vmatprep.subr.bf16.mxu0 0
        %1184 = vmatpush2.bf16.msra.mxu0 0
        %1185 = vmatprep.mubr.bf16.mxu0 0
        %1186 = vmatmul.mubr.bf16.gmra.mxu0 %v1148
        %v1187 = vpop.f32.mrf.mxu0
        %v1188 = vadd.f32 0.0, %v1187
        %v1189 = vpop.f32.mrf.mxu0
        %v1190 = vpop.f32.mrf.mxu0
        %v1191 = vpop.f32.mrf.mxu0
        %1192 = vdwg.mxu0
        %1194 = vrot.lane.b32.xlu0 %v1096, 32
        %v1195 = vpop.permute.xlu0 %1194
        %1198 = vrot.lane.b32.xlu0 %v1142, 64
        %v1199 = vpop.permute.xlu0 %1198
        %1202 = vrot.lane.b32.xlu0 %v1188, 96
        %v1203 = vpop.permute.xlu0 %1202
        %v1205 = vsel %vm760, %v1050, %v1195
        %vm1206 = vcmask 523264
        %v1207 = vsel %vm1206, %v1205, %v1199
        %vm1208 = vcmask 785408
        %v1209 = vsel %vm1208, %v1207, %v1203
        %v1210 = vpack.c.bf16 %v1209, %v1209
        %v1211 = vld [vmem:[%s5] sm:$0xf]
        %v1212 = vld [vmem:[%s5 + $0x4] sm:$0xf]
        %v1213 = vld [vmem:[%s5 + $0x8] sm:$0xf]
        %v1214 = vld [vmem:[%s5 + $0xc] sm:$0xf]
        %v1215 = vld [vmem:[%s5 + $0x10] sm:$0xf]
        %v1216 = vld [vmem:[%s5 + $0x14] sm:$0xf]
        %v1217 = vld [vmem:[%s5 + $0x18] sm:$0xf]
        %v1218 = vld [vmem:[%s5 + $0x1c] sm:$0xf]
        %v1219 = vld [vmem:[%s5 + $0x20] sm:$0xf]
        %v1220 = vld [vmem:[%s5 + $0x24] sm:$0xf]
        %v1221 = vld [vmem:[%s5 + $0x28] sm:$0xf]
        %v1222 = vld [vmem:[%s5 + $0x2c] sm:$0xf]
        %v1223 = vld [vmem:[%s5 + $0x30] sm:$0xf]
        %v1224 = vld [vmem:[%s5 + $0x34] sm:$0xf]
        %v1225 = vld [vmem:[%s5 + $0x38] sm:$0xf]
        %v1226 = vld [vmem:[%s5 + $0x3c] sm:$0xf]
        %v1243 = vunpack.c.l.b16 %v1211
        %v1244 = vunpack.c.l.b16 %v1212
        %v1245 = vunpack.c.l.b16 %v1213
        %v1246 = vunpack.c.l.b16 %v1214
        %v1247 = vunpack.c.l.b16 %v1215
        %v1248 = vunpack.c.l.b16 %v1216
        %v1249 = vunpack.c.l.b16 %v1217
        %v1250 = vunpack.c.l.b16 %v1218
        %v1251 = vunpack.c.l.b16 %v1219
        %v1252 = vunpack.c.l.b16 %v1220
        %v1253 = vunpack.c.l.b16 %v1221
        %v1254 = vunpack.c.l.b16 %v1222
        %v1255 = vunpack.c.l.b16 %v1223
        %v1256 = vunpack.c.l.b16 %v1224
        %v1257 = vunpack.c.l.b16 %v1225
        %v1258 = vunpack.c.l.b16 %v1226
        %v1259 = vpack.c.b16 %v1244, %v1243
        %v1260 = vpack.c.b16 %v1246, %v1245
        %v1261 = vpack.c.b16 %v1248, %v1247
        %v1262 = vpack.c.b16 %v1250, %v1249
        %v1263 = vpack.c.b16 %v1252, %v1251
        %v1264 = vpack.c.b16 %v1254, %v1253
        %v1265 = vpack.c.b16 %v1256, %v1255
        %v1266 = vpack.c.b16 %v1258, %v1257
        %1275 = vmatprep.subr.bf16.mxu0 0
        %1276 = vmatpush1.bf16.msra.mxu0 %v1266
        %1277 = vmatprep.subr.bf16.mxu0 0
        %1278 = vmatpush1.bf16.msra.mxu0 %v1265
        %1279 = vmatprep.subr.bf16.mxu0 0
        %1280 = vmatpush1.bf16.msra.mxu0 %v1264
        %1281 = vmatprep.subr.bf16.mxu0 0
        %1282 = vmatpush1.bf16.msra.mxu0 %v1263
        %1283 = vmatprep.subr.bf16.mxu0 0
        %1284 = vmatpush1.bf16.msra.mxu0 %v1262
        %1285 = vmatprep.subr.bf16.mxu0 0
        %1286 = vmatpush1.bf16.msra.mxu0 %v1261
        %1287 = vmatprep.subr.bf16.mxu0 0
        %1288 = vmatpush1.bf16.msra.mxu0 %v1260
        %1289 = vmatprep.subr.bf16.mxu0 0
        %1290 = vmatpush1.bf16.msra.mxu0 %v1259
        %1291 = vmatprep.subr.bf16.mxu0 0
        %1292 = vmatpush2.bf16.msra.mxu0 0
        %1293 = vmatprep.subr.bf16.mxu0 0
        %1294 = vmatpush2.bf16.msra.mxu0 0
        %1295 = vmatprep.subr.bf16.mxu0 0
        %1296 = vmatpush2.bf16.msra.mxu0 0
        %1297 = vmatprep.subr.bf16.mxu0 0
        %1298 = vmatpush2.bf16.msra.mxu0 0
        %1299 = vmatprep.subr.bf16.mxu0 0
        %1300 = vmatpush2.bf16.msra.mxu0 0
        %1301 = vmatprep.subr.bf16.mxu0 0
        %1302 = vmatpush2.bf16.msra.mxu0 0
        %1303 = vmatprep.subr.bf16.mxu0 0
        %1304 = vmatpush2.bf16.msra.mxu0 0
        %1305 = vmatprep.subr.bf16.mxu0 0
        %1306 = vmatpush2.bf16.msra.mxu0 0
        %1307 = vmatprep.mubr.bf16.mxu0 0
        %1308 = vmatmul.mubr.bf16.gmra.mxu0 %v1210
        %v1309 = vpop.f32.mrf.mxu0
        %v1310 = vadd.f32 %v717, %v1309
        %v1311 = vpop.f32.mrf.mxu0
        %v1312 = vpop.f32.mrf.mxu0
        %v1313 = vpop.f32.mrf.mxu0
        %1314 = vdwg.mxu0
        %v1315 = vadd.f32 %v455, %v1310
        %v1316 = vld [vmem:[%s11 + $0x2] ss:$0 sm:$0xff]
        %v1317 = vld [vmem:[%s11 + $0x3] ss:$0 sm:$0xff]
        %1318 = vadd.xlane.f32.xlu0 %v1315
        %v1319 = vpop.xlane.xlu0 %1318
        %v1320 = vrcp.pop 128.0
        %v1321 = vmul.f32 %v1319, %v1320
        %v1322 = vsub.f32 %v1315, %v1321
        %v1323 = vmul.f32 %v1322, %v1322
        %1324 = vadd.xlane.f32.xlu0 %v1323
        %v1325 = vpop.xlane.xlu0 %1324
        %v1326 = vmul.f32 %v1325, %v1320
        %v1327 = vadd.f32 %v1326, 1e-05
        %v1328 = vrsqrt.pop %v1327
        %v1329 = vmul.f32 %v1322, %v1328
        %v1330 = vmul.f32 %v1329, %v1316
        %v1331 = vadd.f32 %v1330, %v1317
        %v1332 = vpack.c.bf16 %v1331, %v1331
        %v1333 = vld [vmem:[%s6] sm:$0xf]
        %v1334 = vld [vmem:[%s6 + $0x4] sm:$0xf]
        %v1335 = vld [vmem:[%s6 + $0x8] sm:$0xf]
        %v1336 = vld [vmem:[%s6 + $0xc] sm:$0xf]
        %v1337 = vld [vmem:[%s6 + $0x10] sm:$0xf]
        %v1338 = vld [vmem:[%s6 + $0x14] sm:$0xf]
        %v1339 = vld [vmem:[%s6 + $0x18] sm:$0xf]
        %v1340 = vld [vmem:[%s6 + $0x1c] sm:$0xf]
        %v1341 = vld [vmem:[%s6 + $0x20] sm:$0xf]
        %v1342 = vld [vmem:[%s6 + $0x24] sm:$0xf]
        %v1343 = vld [vmem:[%s6 + $0x28] sm:$0xf]
        %v1344 = vld [vmem:[%s6 + $0x2c] sm:$0xf]
        %v1345 = vld [vmem:[%s6 + $0x30] sm:$0xf]
        %v1346 = vld [vmem:[%s6 + $0x34] sm:$0xf]
        %v1347 = vld [vmem:[%s6 + $0x38] sm:$0xf]
        %v1348 = vld [vmem:[%s6 + $0x3c] sm:$0xf]
        %v1349 = vld [vmem:[%s11 + $0x4] ss:$0 sm:$0xff]
        %v1366 = vunpack.c.l.b16 %v1333
        %v1367 = vunpack.c.l.b16 %v1334
        %v1368 = vunpack.c.l.b16 %v1335
        %v1369 = vunpack.c.l.b16 %v1336
        %v1370 = vunpack.c.l.b16 %v1337
        %v1371 = vunpack.c.l.b16 %v1338
        %v1372 = vunpack.c.l.b16 %v1339
        %v1373 = vunpack.c.l.b16 %v1340
        %v1374 = vunpack.c.l.b16 %v1341
        %v1375 = vunpack.c.l.b16 %v1342
        %v1376 = vunpack.c.l.b16 %v1343
        %v1377 = vunpack.c.l.b16 %v1344
        %v1378 = vunpack.c.l.b16 %v1345
        %v1379 = vunpack.c.l.b16 %v1346
        %v1380 = vunpack.c.l.b16 %v1347
        %v1381 = vunpack.c.l.b16 %v1348
        %v1382 = vpack.c.b16 %v1367, %v1366
        %v1383 = vpack.c.b16 %v1369, %v1368
        %v1384 = vpack.c.b16 %v1371, %v1370
        %v1385 = vpack.c.b16 %v1373, %v1372
        %v1386 = vpack.c.b16 %v1375, %v1374
        %v1387 = vpack.c.b16 %v1377, %v1376
        %v1388 = vpack.c.b16 %v1379, %v1378
        %v1389 = vpack.c.b16 %v1381, %v1380
        %1398 = vmatprep.subr.bf16.mxu0 0
        %1399 = vmatpush1.bf16.msra.mxu0 %v1389
        %1400 = vmatprep.subr.bf16.mxu0 0
        %1401 = vmatpush1.bf16.msra.mxu0 %v1388
        %1402 = vmatprep.subr.bf16.mxu0 0
        %1403 = vmatpush1.bf16.msra.mxu0 %v1387
        %1404 = vmatprep.subr.bf16.mxu0 0
        %1405 = vmatpush1.bf16.msra.mxu0 %v1386
        %1406 = vmatprep.subr.bf16.mxu0 0
        %1407 = vmatpush1.bf16.msra.mxu0 %v1385
        %1408 = vmatprep.subr.bf16.mxu0 0
        %1409 = vmatpush1.bf16.msra.mxu0 %v1384
        %1410 = vmatprep.subr.bf16.mxu0 0
        %1411 = vmatpush1.bf16.msra.mxu0 %v1383
        %1412 = vmatprep.subr.bf16.mxu0 0
        %1413 = vmatpush1.bf16.msra.mxu0 %v1382
        %1414 = vmatprep.subr.bf16.mxu0 0
        %1415 = vmatpush2.bf16.msra.mxu0 0
        %1416 = vmatprep.subr.bf16.mxu0 0
        %1417 = vmatpush2.bf16.msra.mxu0 0
        %1418 = vmatprep.subr.bf16.mxu0 0
        %1419 = vmatpush2.bf16.msra.mxu0 0
        %1420 = vmatprep.subr.bf16.mxu0 0
        %1421 = vmatpush2.bf16.msra.mxu0 0
        %1422 = vmatprep.subr.bf16.mxu0 0
        %1423 = vmatpush2.bf16.msra.mxu0 0
        %1424 = vmatprep.subr.bf16.mxu0 0
        %1425 = vmatpush2.bf16.msra.mxu0 0
        %1426 = vmatprep.subr.bf16.mxu0 0
        %1427 = vmatpush2.bf16.msra.mxu0 0
        %1428 = vmatprep.subr.bf16.mxu0 0
        %1429 = vmatpush2.bf16.msra.mxu0 0
        %1430 = vmatprep.mubr.bf16.mxu0 0
        %1431 = vmatmul.mubr.bf16.gmra.mxu0 %v1332
        %v1432 = vpop.f32.mrf.mxu0
        %v1433 = vadd.f32 %v1349, %v1432
        %v1434 = vpop.f32.mrf.mxu0
        %v1435 = vpop.f32.mrf.mxu0
        %v1436 = vpop.f32.mrf.mxu0
        %1437 = vdwg.mxu0
        %v1438 = vpack.c.bf16 %v456, %v456
        %v1439 = vld [vmem:[%s7] sm:$0xff]
        %v1440 = vld [vmem:[%s7 + $0x8] sm:$0xff]
        %v1441 = vld [vmem:[%s7 + $0x10] sm:$0xff]
        %v1442 = vld [vmem:[%s7 + $0x18] sm:$0xff]
        %v1443 = vld [vmem:[%s7 + $0x20] sm:$0xff]
        %v1444 = vld [vmem:[%s7 + $0x28] sm:$0xff]
        %v1445 = vld [vmem:[%s7 + $0x30] sm:$0xff]
        %v1446 = vld [vmem:[%s7 + $0x38] sm:$0xff]
        %v1447 = vld [vmem:[%s7 + $0x40] sm:$0xff]
        %v1448 = vld [vmem:[%s7 + $0x48] sm:$0xff]
        %v1449 = vld [vmem:[%s7 + $0x50] sm:$0xff]
        %v1450 = vld [vmem:[%s7 + $0x58] sm:$0xff]
        %v1451 = vld [vmem:[%s7 + $0x60] sm:$0xff]
        %v1452 = vld [vmem:[%s7 + $0x68] sm:$0xff]
        %v1453 = vld [vmem:[%s7 + $0x70] sm:$0xff]
        %v1454 = vld [vmem:[%s7 + $0x78] sm:$0xff]
        %s1455 = scalar_lea.vmem %s11, 5
        %v1456 = vld [vmem:[%s1455] ss:$8 sm:$0x3]
        %v1458 = vlaneseq
        %v1459 = vshrl.u32 %v1458, 7
        %v1460 = vsub.s32 0, %v1459
        %v1461 = vrot.slane %v1456, %v1460
        %v1462 = vlaneseq
        %v1463 = vshrl.u32 %v1462, 7
        %v1464 = vsub.s32 1, %v1463
        %v1465 = vrot.slane %v1456, %v1464
        %v1484 = vunpack.c.l.b16 %v1439
        %v1485 = vunpack.c.h.b16 %v1439
        %v1486 = vunpack.c.l.b16 %v1440
        %v1487 = vunpack.c.h.b16 %v1440
        %v1488 = vunpack.c.l.b16 %v1441
        %v1489 = vunpack.c.h.b16 %v1441
        %v1490 = vunpack.c.l.b16 %v1442
        %v1491 = vunpack.c.h.b16 %v1442
        %v1492 = vunpack.c.l.b16 %v1443
        %v1493 = vunpack.c.h.b16 %v1443
        %v1494 = vunpack.c.l.b16 %v1444
        %v1495 = vunpack.c.h.b16 %v1444
        %v1496 = vunpack.c.l.b16 %v1445
        %v1497 = vunpack.c.h.b16 %v1445
        %v1498 = vunpack.c.l.b16 %v1446
        %v1499 = vunpack.c.h.b16 %v1446
        %v1500 = vunpack.c.l.b16 %v1447
        %v1501 = vunpack.c.h.b16 %v1447
        %v1502 = vunpack.c.l.b16 %v1448
        %v1503 = vunpack.c.h.b16 %v1448
        %v1504 = vunpack.c.l.b16 %v1449
        %v1505 = vunpack.c.h.b16 %v1449
        %v1506 = vunpack.c.l.b16 %v1450
        %v1507 = vunpack.c.h.b16 %v1450
        %v1508 = vunpack.c.l.b16 %v1451
        %v1509 = vunpack.c.h.b16 %v1451
        %v1510 = vunpack.c.l.b16 %v1452
        %v1511 = vunpack.c.h.b16 %v1452
        %v1512 = vunpack.c.l.b16 %v1453
        %v1513 = vunpack.c.h.b16 %v1453
        %v1514 = vunpack.c.l.b16 %v1454
        %v1515 = vunpack.c.h.b16 %v1454
        %v1516 = vpack.c.b16 %v1486, %v1484
        %v1517 = vpack.c.b16 %v1487, %v1485
        %v1518 = vpack.c.b16 %v1490, %v1488
        %v1519 = vpack.c.b16 %v1491, %v1489
        %v1520 = vpack.c.b16 %v1494, %v1492
        %v1521 = vpack.c.b16 %v1495, %v1493
        %v1522 = vpack.c.b16 %v1498, %v1496
        %v1523 = vpack.c.b16 %v1499, %v1497
        %v1524 = vpack.c.b16 %v1502, %v1500
        %v1525 = vpack.c.b16 %v1503, %v1501
        %v1526 = vpack.c.b16 %v1506, %v1504
        %v1527 = vpack.c.b16 %v1507, %v1505
        %v1528 = vpack.c.b16 %v1510, %v1508
        %v1529 = vpack.c.b16 %v1511, %v1509
        %v1530 = vpack.c.b16 %v1514, %v1512
        %v1531 = vpack.c.b16 %v1515, %v1513
        %1548 = vmatprep.subr.bf16.mxu0 %v1531
        %1549 = vmatpush1.bf16.msra.mxu0 %v1530
        %1550 = vmatprep.subr.bf16.mxu0 %v1529
        %1551 = vmatpush1.bf16.msra.mxu0 %v1528
        %1552 = vmatprep.subr.bf16.mxu0 %v1527
        %1553 = vmatpush1.bf16.msra.mxu0 %v1526
        %1554 = vmatprep.subr.bf16.mxu0 %v1525
        %1555 = vmatpush1.bf16.msra.mxu0 %v1524
        %1556 = vmatprep.subr.bf16.mxu0 %v1523
        %1557 = vmatpush1.bf16.msra.mxu0 %v1522
        %1558 = vmatprep.subr.bf16.mxu0 %v1521
        %1559 = vmatpush1.bf16.msra.mxu0 %v1520
        %1560 = vmatprep.subr.bf16.mxu0 %v1519
        %1561 = vmatpush1.bf16.msra.mxu0 %v1518
        %1562 = vmatprep.subr.bf16.mxu0 %v1517
        %1563 = vmatpush1.bf16.msra.mxu0 %v1516
        %1564 = vmatprep.subr.bf16.mxu0 0
        %1565 = vmatpush2.bf16.msra.mxu0 0
        %1566 = vmatprep.subr.bf16.mxu0 0
        %1567 = vmatpush2.bf16.msra.mxu0 0
        %1568 = vmatprep.subr.bf16.mxu0 0
        %1569 = vmatpush2.bf16.msra.mxu0 0
        %1570 = vmatprep.subr.bf16.mxu0 0
        %1571 = vmatpush2.bf16.msra.mxu0 0
        %1572 = vmatprep.subr.bf16.mxu0 0
        %1573 = vmatpush2.bf16.msra.mxu0 0
        %1574 = vmatprep.subr.bf16.mxu0 0
        %1575 = vmatpush2.bf16.msra.mxu0 0
        %1576 = vmatprep.subr.bf16.mxu0 0
        %1577 = vmatpush2.bf16.msra.mxu0 0
        %1578 = vmatprep.subr.bf16.mxu0 0
        %1579 = vmatpush2.bf16.msra.mxu0 0
        %1580 = vmatprep.mubr.bf16.mxu0 0
        %1581 = vmatmul.mubr.bf16.gmra.mxu0 %v1438
        %v1582 = vpop.f32.mrf.mxu0
        %v1583 = vadd.f32 %v1461, %v1582
        %v1584 = vpop.f32.mrf.mxu0
        %v1585 = vadd.f32 %v1465, %v1584
        %v1586 = vpop.f32.mrf.mxu0
        %v1587 = vpop.f32.mrf.mxu0
        %1588 = vdwg.mxu0
        %v1589 = vld [vmem:[%s453] sm:$0x1]
        %v1590 = vld [vmem:[%s11 + $0x6] ss:$0 sm:$0xff]
        %1592 = vrot.lane.b32.xlu0 %v1433, 96
        %v1593 = vpop.permute.xlu0 %1592
        %1595 = vrot.lane.b32.xlu0 %v1433, 64
        %v1596 = vpop.permute.xlu0 %1595
        %1598 = vrot.lane.b32.xlu0 %v1433, 32
        %v1599 = vpop.permute.xlu0 %1598
        %v1601 = vpack.c.bf16 %v1433, %v1433
        %v1602 = vpack.c.bf16 %v1593, %v1593
        %v1603 = vpack.c.bf16 %v1596, %v1596
        %v1604 = vpack.c.bf16 %v1599, %v1599
        %1606 = vrot.lane.b32.xlu0 %v1583, 96
        %v1607 = vpop.permute.xlu0 %1606
        %1609 = vrot.lane.b32.xlu0 %v1583, 64
        %v1610 = vpop.permute.xlu0 %1609
        %1612 = vrot.lane.b32.xlu0 %v1583, 32
        %v1613 = vpop.permute.xlu0 %1612
        %v1615 = vpack.c.bf16 %v1583, %v1583
        %v1616 = vpack.c.bf16 %v1607, %v1607
        %v1617 = vpack.c.bf16 %v1610, %v1610
        %v1618 = vpack.c.bf16 %v1613, %v1613
        %1620 = vrot.lane.b32.xlu0 %v1585, 96
        %v1621 = vpop.permute.xlu0 %1620
        %1623 = vrot.lane.b32.xlu0 %v1585, 64
        %v1624 = vpop.permute.xlu0 %1623
        %1626 = vrot.lane.b32.xlu0 %v1585, 32
        %v1627 = vpop.permute.xlu0 %1626
        %v1629 = vpack.c.bf16 %v1585, %v1585
        %v1630 = vpack.c.bf16 %v1621, %v1621
        %v1631 = vpack.c.bf16 %v1624, %v1624
        %v1632 = vpack.c.bf16 %v1627, %v1627
        %v1634 = vsel %vm760, %v1601, 0
        %v1637 = vsel %vm760, %v1615, 0
        %1639 = vmatprep.subr.bf16.mxu0 0
        %1640 = vmatpush1.bf16.xpose.msra.mxu0 0
        %1641 = vmatprep.subr.bf16.mxu0 0
        %1642 = vmatpush1.bf16.xpose.msra.mxu0 0
        %1643 = vmatprep.subr.bf16.mxu0 0
        %1644 = vmatpush1.bf16.xpose.msra.mxu0 0
        %1645 = vmatprep.subr.bf16.mxu0 0
        %1646 = vmatpush1.bf16.xpose.msra.mxu0 0
        %1647 = vmatprep.subr.bf16.mxu0 0
        %1648 = vmatpush1.bf16.xpose.msra.mxu0 0
        %1649 = vmatprep.subr.bf16.mxu0 0
        %1650 = vmatpush1.bf16.xpose.msra.mxu0 0
        %1651 = vmatprep.subr.bf16.mxu0 0
        %1652 = vmatpush1.bf16.xpose.msra.mxu0 0
        %1653 = vmatprep.subr.bf16.mxu0 0
        %1654 = vmatpush1.bf16.xpose.msra.mxu0 %v1637
        %1655 = vmatprep.subr.bf16.mxu0 0
        %1656 = vmatpush2.bf16.xpose.msra.mxu0 0
        %1657 = vmatprep.subr.bf16.mxu0 0
        %1658 = vmatpush2.bf16.xpose.msra.mxu0 0
        %1659 = vmatprep.subr.bf16.mxu0 0
        %1660 = vmatpush2.bf16.xpose.msra.mxu0 0
        %1661 = vmatprep.subr.bf16.mxu0 0
        %1662 = vmatpush2.bf16.xpose.msra.mxu0 0
        %1663 = vmatprep.subr.bf16.mxu0 0
        %1664 = vmatpush2.bf16.xpose.msra.mxu0 0
        %1665 = vmatprep.subr.bf16.mxu0 0
        %1666 = vmatpush2.bf16.xpose.msra.mxu0 0
        %1667 = vmatprep.subr.bf16.mxu0 0
        %1668 = vmatpush2.bf16.xpose.msra.mxu0 0
        %1669 = vmatprep.subr.bf16.mxu0 0
        %1670 = vmatpush2.bf16.xpose.msra.mxu0 0
        %1671 = vmatprep.mubr.bf16.mxu0 0
        %1672 = vmatmul.mubr.bf16.gmra.mxu0 %v1634
        %v1673 = vpop.f32.mrf.mxu0
        %v1674 = vadd.f32 0.0, %v1673
        %v1675 = vpop.f32.mrf.mxu0
        %v1676 = vpop.f32.mrf.mxu0
        %v1677 = vpop.f32.mrf.mxu0
        %1678 = vdwg.mxu0
        %v1680 = vsel %vm760, %v1602, 0
        %v1683 = vsel %vm760, %v1616, 0
        %1685 = vmatprep.subr.bf16.mxu0 0
        %1686 = vmatpush1.bf16.xpose.msra.mxu0 0
        %1687 = vmatprep.subr.bf16.mxu0 0
        %1688 = vmatpush1.bf16.xpose.msra.mxu0 0
        %1689 = vmatprep.subr.bf16.mxu0 0
        %1690 = vmatpush1.bf16.xpose.msra.mxu0 0
        %1691 = vmatprep.subr.bf16.mxu0 0
        %1692 = vmatpush1.bf16.xpose.msra.mxu0 0
        %1693 = vmatprep.subr.bf16.mxu0 0
        %1694 = vmatpush1.bf16.xpose.msra.mxu0 0
        %1695 = vmatprep.subr.bf16.mxu0 0
        %1696 = vmatpush1.bf16.xpose.msra.mxu0 0
        %1697 = vmatprep.subr.bf16.mxu0 0
        %1698 = vmatpush1.bf16.xpose.msra.mxu0 0
        %1699 = vmatprep.subr.bf16.mxu0 0
        %1700 = vmatpush1.bf16.xpose.msra.mxu0 %v1683
        %1701 = vmatprep.subr.bf16.mxu0 0
        %1702 = vmatpush2.bf16.xpose.msra.mxu0 0
        %1703 = vmatprep.subr.bf16.mxu0 0
        %1704 = vmatpush2.bf16.xpose.msra.mxu0 0
        %1705 = vmatprep.subr.bf16.mxu0 0
        %1706 = vmatpush2.bf16.xpose.msra.mxu0 0
        %1707 = vmatprep.subr.bf16.mxu0 0
        %1708 = vmatpush2.bf16.xpose.msra.mxu0 0
        %1709 = vmatprep.subr.bf16.mxu0 0
        %1710 = vmatpush2.bf16.xpose.msra.mxu0 0
        %1711 = vmatprep.subr.bf16.mxu0 0
        %1712 = vmatpush2.bf16.xpose.msra.mxu0 0
        %1713 = vmatprep.subr.bf16.mxu0 0
        %1714 = vmatpush2.bf16.xpose.msra.mxu0 0
        %1715 = vmatprep.subr.bf16.mxu0 0
        %1716 = vmatpush2.bf16.xpose.msra.mxu0 0
        %1717 = vmatprep.mubr.bf16.mxu0 0
        %1718 = vmatmul.mubr.bf16.gmra.mxu0 %v1680
        %v1719 = vpop.f32.mrf.mxu0
        %v1720 = vadd.f32 0.0, %v1719
        %v1721 = vpop.f32.mrf.mxu0
        %v1722 = vpop.f32.mrf.mxu0
        %v1723 = vpop.f32.mrf.mxu0
        %1724 = vdwg.mxu0
        %v1726 = vsel %vm760, %v1603, 0
        %v1729 = vsel %vm760, %v1617, 0
        %1731 = vmatprep.subr.bf16.mxu0 0
        %1732 = vmatpush1.bf16.xpose.msra.mxu0 0
        %1733 = vmatprep.subr.bf16.mxu0 0
        %1734 = vmatpush1.bf16.xpose.msra.mxu0 0
        %1735 = vmatprep.subr.bf16.mxu0 0
        %1736 = vmatpush1.bf16.xpose.msra.mxu0 0
        %1737 = vmatprep.subr.bf16.mxu0 0
        %1738 = vmatpush1.bf16.xpose.msra.mxu0 0
        %1739 = vmatprep.subr.bf16.mxu0 0
        %1740 = vmatpush1.bf16.xpose.msra.mxu0 0
        %1741 = vmatprep.subr.bf16.mxu0 0
        %1742 = vmatpush1.bf16.xpose.msra.mxu0 0
        %1743 = vmatprep.subr.bf16.mxu0 0
        %1744 = vmatpush1.bf16.xpose.msra.mxu0 0
        %1745 = vmatprep.subr.bf16.mxu0 0
        %1746 = vmatpush1.bf16.xpose.msra.mxu0 %v1729
        %1747 = vmatprep.subr.bf16.mxu0 0
        %1748 = vmatpush2.bf16.xpose.msra.mxu0 0
        %1749 = vmatprep.subr.bf16.mxu0 0
        %1750 = vmatpush2.bf16.xpose.msra.mxu0 0
        %1751 = vmatprep.subr.bf16.mxu0 0
        %1752 = vmatpush2.bf16.xpose.msra.mxu0 0
        %1753 = vmatprep.subr.bf16.mxu0 0
        %1754 = vmatpush2.bf16.xpose.msra.mxu0 0
        %1755 = vmatprep.subr.bf16.mxu0 0
        %1756 = vmatpush2.bf16.xpose.msra.mxu0 0
        %1757 = vmatprep.subr.bf16.mxu0 0
        %1758 = vmatpush2.bf16.xpose.msra.mxu0 0
        %1759 = vmatprep.subr.bf16.mxu0 0
        %1760 = vmatpush2.bf16.xpose.msra.mxu0 0
        %1761 = vmatprep.subr.bf16.mxu0 0
        %1762 = vmatpush2.bf16.xpose.msra.mxu0 0
        %1763 = vmatprep.mubr.bf16.mxu0 0
        %1764 = vmatmul.mubr.bf16.gmra.mxu0 %v1726
        %v1765 = vpop.f32.mrf.mxu0
        %v1766 = vadd.f32 0.0, %v1765
        %v1767 = vpop.f32.mrf.mxu0
        %v1768 = vpop.f32.mrf.mxu0
        %v1769 = vpop.f32.mrf.mxu0
        %1770 = vdwg.mxu0
        %v1772 = vsel %vm760, %v1604, 0
        %v1775 = vsel %vm760, %v1618, 0
        %1777 = vmatprep.subr.bf16.mxu0 0
        %1778 = vmatpush1.bf16.xpose.msra.mxu0 0
        %1779 = vmatprep.subr.bf16.mxu0 0
        %1780 = vmatpush1.bf16.xpose.msra.mxu0 0
        %1781 = vmatprep.subr.bf16.mxu0 0
        %1782 = vmatpush1.bf16.xpose.msra.mxu0 0
        %1783 = vmatprep.subr.bf16.mxu0 0
        %1784 = vmatpush1.bf16.xpose.msra.mxu0 0
        %1785 = vmatprep.subr.bf16.mxu0 0
        %1786 = vmatpush1.bf16.xpose.msra.mxu0 0
        %1787 = vmatprep.subr.bf16.mxu0 0
        %1788 = vmatpush1.bf16.xpose.msra.mxu0 0
        %1789 = vmatprep.subr.bf16.mxu0 0
        %1790 = vmatpush1.bf16.xpose.msra.mxu0 0
        %1791 = vmatprep.subr.bf16.mxu0 0
        %1792 = vmatpush1.bf16.xpose.msra.mxu0 %v1775
        %1793 = vmatprep.subr.bf16.mxu0 0
        %1794 = vmatpush2.bf16.xpose.msra.mxu0 0
        %1795 = vmatprep.subr.bf16.mxu0 0
        %1796 = vmatpush2.bf16.xpose.msra.mxu0 0
        %1797 = vmatprep.subr.bf16.mxu0 0
        %1798 = vmatpush2.bf16.xpose.msra.mxu0 0
        %1799 = vmatprep.subr.bf16.mxu0 0
        %1800 = vmatpush2.bf16.xpose.msra.mxu0 0
        %1801 = vmatprep.subr.bf16.mxu0 0
        %1802 = vmatpush2.bf16.xpose.msra.mxu0 0
        %1803 = vmatprep.subr.bf16.mxu0 0
        %1804 = vmatpush2.bf16.xpose.msra.mxu0 0
        %1805 = vmatprep.subr.bf16.mxu0 0
        %1806 = vmatpush2.bf16.xpose.msra.mxu0 0
        %1807 = vmatprep.subr.bf16.mxu0 0
        %1808 = vmatpush2.bf16.xpose.msra.mxu0 0
        %1809 = vmatprep.mubr.bf16.mxu0 0
        %1810 = vmatmul.mubr.bf16.gmra.mxu0 %v1772
        %v1811 = vpop.f32.mrf.mxu0
        %v1812 = vadd.f32 0.0, %v1811
        %v1813 = vpop.f32.mrf.mxu0
        %v1814 = vpop.f32.mrf.mxu0
        %v1815 = vpop.f32.mrf.mxu0
        %1816 = vdwg.mxu0
        %v1817 = vmul.f32 %v1674, 0.17677669
        %v1818 = vmul.f32 %v1720, 0.17677669
        %v1819 = vmul.f32 %v1766, 0.17677669
        %v1820 = vmul.f32 %v1812, 0.17677669
        %v1822 = vlaneseq
        %v1823 = vshrl.u32 %v1822, 7
        %v1824 = vsub.s32 0, %v1823
        %v1825 = vrot.slane %v1589, %v1824
        %v1827 = vadd.f32 %v1817, %v1825
        %v1828 = vadd.f32 %v1818, %v1825
        %v1829 = vadd.f32 %v1819, %v1825
        %v1830 = vadd.f32 %v1820, %v1825
        %v1831 = vsel %vm959, %v1827, -inf
        %1832 = vmax.xlane.f32.xlu0 %v1831
        %v1833 = vpop.xlane.xlu0 %1832
        %v1834 = vsel %vm959, %v1828, -inf
        %1835 = vmax.xlane.f32.xlu0 %v1834
        %v1836 = vpop.xlane.xlu0 %1835
        %v1837 = vsel %vm959, %v1829, -inf
        %1838 = vmax.xlane.f32.xlu0 %v1837
        %v1839 = vpop.xlane.xlu0 %1838
        %v1840 = vsel %vm959, %v1830, -inf
        %1841 = vmax.xlane.f32.xlu0 %v1840
        %v1842 = vpop.xlane.xlu0 %1841
        %v1843 = vsub.f32 %v1827, %v1833
        %v1844 = vsub.f32 %v1828, %v1836
        %v1845 = vsub.f32 %v1829, %v1839
        %v1846 = vsub.f32 %v1830, %v1842
        %v1847 = vmul.f32 %v1843, 1.442695
        %v1848 = vpow.pop %v1847
        %v1849 = vmul.f32 %v1844, 1.442695
        %v1850 = vpow.pop %v1849
        %v1851 = vmul.f32 %v1845, 1.442695
        %v1852 = vpow.pop %v1851
        %v1853 = vmul.f32 %v1846, 1.442695
        %v1854 = vpow.pop %v1853
        %v1855 = vsel %vm959, %v1848, 0.0
        %1856 = vadd.xlane.f32.xlu0 %v1855
        %v1857 = vpop.xlane.xlu0 %1856
        %v1858 = vsel %vm959, %v1850, 0.0
        %1859 = vadd.xlane.f32.xlu0 %v1858
        %v1860 = vpop.xlane.xlu0 %1859
        %v1861 = vsel %vm959, %v1852, 0.0
        %1862 = vadd.xlane.f32.xlu0 %v1861
        %v1863 = vpop.xlane.xlu0 %1862
        %v1864 = vsel %vm959, %v1854, 0.0
        %1865 = vadd.xlane.f32.xlu0 %v1864
        %v1866 = vpop.xlane.xlu0 %1865
        %v1867 = vrcp.pop %v1857
        %v1868 = vrcp.pop %v1860
        %v1869 = vrcp.pop %v1863
        %v1870 = vrcp.pop %v1866
        %v1871 = vmul.f32 %v1848, %v1867
        %v1872 = vmul.f32 %v1850, %v1868
        %v1873 = vmul.f32 %v1852, %v1869
        %v1874 = vmul.f32 %v1854, %v1870
        %v1875 = vpack.c.bf16 %v1871, %v1871
        %v1876 = vpack.c.bf16 %v1872, %v1872
        %v1877 = vpack.c.bf16 %v1873, %v1873
        %v1878 = vpack.c.bf16 %v1874, %v1874
        %v1880 = vsel %vm959, %v1875, 0
        %v1883 = vsel %vm1011, %v1629, 0
        %1885 = vmatprep.subr.bf16.mxu0 0
        %1886 = vmatpush1.bf16.msra.mxu0 0
        %1887 = vmatprep.subr.bf16.mxu0 0
        %1888 = vmatpush1.bf16.msra.mxu0 0
        %1889 = vmatprep.subr.bf16.mxu0 0
        %1890 = vmatpush1.bf16.msra.mxu0 0
        %1891 = vmatprep.subr.bf16.mxu0 0
        %1892 = vmatpush1.bf16.msra.mxu0 0
        %1893 = vmatprep.subr.bf16.mxu0 0
        %1894 = vmatpush1.bf16.msra.mxu0 0
        %1895 = vmatprep.subr.bf16.mxu0 0
        %1896 = vmatpush1.bf16.msra.mxu0 0
        %1897 = vmatprep.subr.bf16.mxu0 0
        %1898 = vmatpush1.bf16.msra.mxu0 0
        %1899 = vmatprep.subr.bf16.mxu0 0
        %1900 = vmatpush1.bf16.msra.mxu0 %v1883
        %1901 = vmatprep.subr.bf16.mxu0 0
        %1902 = vmatpush2.bf16.msra.mxu0 0
        %1903 = vmatprep.subr.bf16.mxu0 0
        %1904 = vmatpush2.bf16.msra.mxu0 0
        %1905 = vmatprep.subr.bf16.mxu0 0
        %1906 = vmatpush2.bf16.msra.mxu0 0
        %1907 = vmatprep.subr.bf16.mxu0 0
        %1908 = vmatpush2.bf16.msra.mxu0 0
        %1909 = vmatprep.subr.bf16.mxu0 0
        %1910 = vmatpush2.bf16.msra.mxu0 0
        %1911 = vmatprep.subr.bf16.mxu0 0
        %1912 = vmatpush2.bf16.msra.mxu0 0
        %1913 = vmatprep.subr.bf16.mxu0 0
        %1914 = vmatpush2.bf16.msra.mxu0 0
        %1915 = vmatprep.subr.bf16.mxu0 0
        %1916 = vmatpush2.bf16.msra.mxu0 0
        %1917 = vmatprep.mubr.bf16.mxu0 0
        %1918 = vmatmul.mubr.bf16.gmra.mxu0 %v1880
        %v1919 = vpop.f32.mrf.mxu0
        %v1920 = vadd.f32 0.0, %v1919
        %v1921 = vpop.f32.mrf.mxu0
        %v1922 = vpop.f32.mrf.mxu0
        %v1923 = vpop.f32.mrf.mxu0
        %1924 = vdwg.mxu0
        %v1926 = vsel %vm959, %v1876, 0
        %v1929 = vsel %vm1011, %v1630, 0
        %1931 = vmatprep.subr.bf16.mxu0 0
        %1932 = vmatpush1.bf16.msra.mxu0 0
        %1933 = vmatprep.subr.bf16.mxu0 0
        %1934 = vmatpush1.bf16.msra.mxu0 0
        %1935 = vmatprep.subr.bf16.mxu0 0
        %1936 = vmatpush1.bf16.msra.mxu0 0
        %1937 = vmatprep.subr.bf16.mxu0 0
        %1938 = vmatpush1.bf16.msra.mxu0 0
        %1939 = vmatprep.subr.bf16.mxu0 0
        %1940 = vmatpush1.bf16.msra.mxu0 0
        %1941 = vmatprep.subr.bf16.mxu0 0
        %1942 = vmatpush1.bf16.msra.mxu0 0
        %1943 = vmatprep.subr.bf16.mxu0 0
        %1944 = vmatpush1.bf16.msra.mxu0 0
        %1945 = vmatprep.subr.bf16.mxu0 0
        %1946 = vmatpush1.bf16.msra.mxu0 %v1929
        %1947 = vmatprep.subr.bf16.mxu0 0
        %1948 = vmatpush2.bf16.msra.mxu0 0
        %1949 = vmatprep.subr.bf16.mxu0 0
        %1950 = vmatpush2.bf16.msra.mxu0 0
        %1951 = vmatprep.subr.bf16.mxu0 0
        %1952 = vmatpush2.bf16.msra.mxu0 0
        %1953 = vmatprep.subr.bf16.mxu0 0
        %1954 = vmatpush2.bf16.msra.mxu0 0
        %1955 = vmatprep.subr.bf16.mxu0 0
        %1956 = vmatpush2.bf16.msra.mxu0 0
        %1957 = vmatprep.subr.bf16.mxu0 0
        %1958 = vmatpush2.bf16.msra.mxu0 0
        %1959 = vmatprep.subr.bf16.mxu0 0
        %1960 = vmatpush2.bf16.msra.mxu0 0
        %1961 = vmatprep.subr.bf16.mxu0 0
        %1962 = vmatpush2.bf16.msra.mxu0 0
        %1963 = vmatprep.mubr.bf16.mxu0 0
        %1964 = vmatmul.mubr.bf16.gmra.mxu0 %v1926
        %v1965 = vpop.f32.mrf.mxu0
        %v1966 = vadd.f32 0.0, %v1965
        %v1967 = vpop.f32.mrf.mxu0
        %v1968 = vpop.f32.mrf.mxu0
        %v1969 = vpop.f32.mrf.mxu0
        %1970 = vdwg.mxu0
        %v1972 = vsel %vm959, %v1877, 0
        %v1975 = vsel %vm1011, %v1631, 0
        %1977 = vmatprep.subr.bf16.mxu0 0
        %1978 = vmatpush1.bf16.msra.mxu0 0
        %1979 = vmatprep.subr.bf16.mxu0 0
        %1980 = vmatpush1.bf16.msra.mxu0 0
        %1981 = vmatprep.subr.bf16.mxu0 0
        %1982 = vmatpush1.bf16.msra.mxu0 0
        %1983 = vmatprep.subr.bf16.mxu0 0
        %1984 = vmatpush1.bf16.msra.mxu0 0
        %1985 = vmatprep.subr.bf16.mxu0 0
        %1986 = vmatpush1.bf16.msra.mxu0 0
        %1987 = vmatprep.subr.bf16.mxu0 0
        %1988 = vmatpush1.bf16.msra.mxu0 0
        %1989 = vmatprep.subr.bf16.mxu0 0
        %1990 = vmatpush1.bf16.msra.mxu0 0
        %1991 = vmatprep.subr.bf16.mxu0 0
        %1992 = vmatpush1.bf16.msra.mxu0 %v1975
        %1993 = vmatprep.subr.bf16.mxu0 0
        %1994 = vmatpush2.bf16.msra.mxu0 0
        %1995 = vmatprep.subr.bf16.mxu0 0
        %1996 = vmatpush2.bf16.msra.mxu0 0
        %1997 = vmatprep.subr.bf16.mxu0 0
        %1998 = vmatpush2.bf16.msra.mxu0 0
        %1999 = vmatprep.subr.bf16.mxu0 0
        %2000 = vmatpush2.bf16.msra.mxu0 0
        %2001 = vmatprep.subr.bf16.mxu0 0
        %2002 = vmatpush2.bf16.msra.mxu0 0
        %2003 = vmatprep.subr.bf16.mxu0 0
        %2004 = vmatpush2.bf16.msra.mxu0 0
        %2005 = vmatprep.subr.bf16.mxu0 0
        %2006 = vmatpush2.bf16.msra.mxu0 0
        %2007 = vmatprep.subr.bf16.mxu0 0
        %2008 = vmatpush2.bf16.msra.mxu0 0
        %2009 = vmatprep.mubr.bf16.mxu0 0
        %2010 = vmatmul.mubr.bf16.gmra.mxu0 %v1972
        %v2011 = vpop.f32.mrf.mxu0
        %v2012 = vadd.f32 0.0, %v2011
        %v2013 = vpop.f32.mrf.mxu0
        %v2014 = vpop.f32.mrf.mxu0
        %v2015 = vpop.f32.mrf.mxu0
        %2016 = vdwg.mxu0
        %v2018 = vsel %vm959, %v1878, 0
        %v2021 = vsel %vm1011, %v1632, 0
        %2023 = vmatprep.subr.bf16.mxu0 0
        %2024 = vmatpush1.bf16.msra.mxu0 0
        %2025 = vmatprep.subr.bf16.mxu0 0
        %2026 = vmatpush1.bf16.msra.mxu0 0
        %2027 = vmatprep.subr.bf16.mxu0 0
        %2028 = vmatpush1.bf16.msra.mxu0 0
        %2029 = vmatprep.subr.bf16.mxu0 0
        %2030 = vmatpush1.bf16.msra.mxu0 0
        %2031 = vmatprep.subr.bf16.mxu0 0
        %2032 = vmatpush1.bf16.msra.mxu0 0
        %2033 = vmatprep.subr.bf16.mxu0 0
        %2034 = vmatpush1.bf16.msra.mxu0 0
        %2035 = vmatprep.subr.bf16.mxu0 0
        %2036 = vmatpush1.bf16.msra.mxu0 0
        %2037 = vmatprep.subr.bf16.mxu0 0
        %2038 = vmatpush1.bf16.msra.mxu0 %v2021
        %2039 = vmatprep.subr.bf16.mxu0 0
        %2040 = vmatpush2.bf16.msra.mxu0 0
        %2041 = vmatprep.subr.bf16.mxu0 0
        %2042 = vmatpush2.bf16.msra.mxu0 0
        %2043 = vmatprep.subr.bf16.mxu0 0
        %2044 = vmatpush2.bf16.msra.mxu0 0
        %2045 = vmatprep.subr.bf16.mxu0 0
        %2046 = vmatpush2.bf16.msra.mxu0 0
        %2047 = vmatprep.subr.bf16.mxu0 0
        %2048 = vmatpush2.bf16.msra.mxu0 0
        %2049 = vmatprep.subr.bf16.mxu0 0
        %2050 = vmatpush2.bf16.msra.mxu0 0
        %2051 = vmatprep.subr.bf16.mxu0 0
        %2052 = vmatpush2.bf16.msra.mxu0 0
        %2053 = vmatprep.subr.bf16.mxu0 0
        %2054 = vmatpush2.bf16.msra.mxu0 0
        %2055 = vmatprep.mubr.bf16.mxu0 0
        %2056 = vmatmul.mubr.bf16.gmra.mxu0 %v2018
        %v2057 = vpop.f32.mrf.mxu0
        %v2058 = vadd.f32 0.0, %v2057
        %v2059 = vpop.f32.mrf.mxu0
        %v2060 = vpop.f32.mrf.mxu0
        %v2061 = vpop.f32.mrf.mxu0
        %2062 = vdwg.mxu0
        %2064 = vrot.lane.b32.xlu0 %v1966, 32
        %v2065 = vpop.permute.xlu0 %2064
        %2068 = vrot.lane.b32.xlu0 %v2012, 64
        %v2069 = vpop.permute.xlu0 %2068
        %2072 = vrot.lane.b32.xlu0 %v2058, 96
        %v2073 = vpop.permute.xlu0 %2072
        %v2075 = vsel %vm760, %v1920, %v2065
        %v2076 = vsel %vm1206, %v2075, %v2069
        %v2077 = vsel %vm1208, %v2076, %v2073
        %v2078 = vpack.c.bf16 %v2077, %v2077
        %v2079 = vld [vmem:[%s8] sm:$0xf]
        %v2080 = vld [vmem:[%s8 + $0x4] sm:$0xf]
        %v2081 = vld [vmem:[%s8 + $0x8] sm:$0xf]
        %v2082 = vld [vmem:[%s8 + $0xc] sm:$0xf]
        %v2083 = vld [vmem:[%s8 + $0x10] sm:$0xf]
        %v2084 = vld [vmem:[%s8 + $0x14] sm:$0xf]
        %v2085 = vld [vmem:[%s8 + $0x18] sm:$0xf]
        %v2086 = vld [vmem:[%s8 + $0x1c] sm:$0xf]
        %v2087 = vld [vmem:[%s8 + $0x20] sm:$0xf]
        %v2088 = vld [vmem:[%s8 + $0x24] sm:$0xf]
        %v2089 = vld [vmem:[%s8 + $0x28] sm:$0xf]
        %v2090 = vld [vmem:[%s8 + $0x2c] sm:$0xf]
        %v2091 = vld [vmem:[%s8 + $0x30] sm:$0xf]
        %v2092 = vld [vmem:[%s8 + $0x34] sm:$0xf]
        %v2093 = vld [vmem:[%s8 + $0x38] sm:$0xf]
        %v2094 = vld [vmem:[%s8 + $0x3c] sm:$0xf]
        %v2111 = vunpack.c.l.b16 %v2079
        %v2112 = vunpack.c.l.b16 %v2080
        %v2113 = vunpack.c.l.b16 %v2081
        %v2114 = vunpack.c.l.b16 %v2082
        %v2115 = vunpack.c.l.b16 %v2083
        %v2116 = vunpack.c.l.b16 %v2084
        %v2117 = vunpack.c.l.b16 %v2085
        %v2118 = vunpack.c.l.b16 %v2086
        %v2119 = vunpack.c.l.b16 %v2087
        %v2120 = vunpack.c.l.b16 %v2088
        %v2121 = vunpack.c.l.b16 %v2089
        %v2122 = vunpack.c.l.b16 %v2090
        %v2123 = vunpack.c.l.b16 %v2091
        %v2124 = vunpack.c.l.b16 %v2092
        %v2125 = vunpack.c.l.b16 %v2093
        %v2126 = vunpack.c.l.b16 %v2094
        %v2127 = vpack.c.b16 %v2112, %v2111
        %v2128 = vpack.c.b16 %v2114, %v2113
        %v2129 = vpack.c.b16 %v2116, %v2115
        %v2130 = vpack.c.b16 %v2118, %v2117
        %v2131 = vpack.c.b16 %v2120, %v2119
        %v2132 = vpack.c.b16 %v2122, %v2121
        %v2133 = vpack.c.b16 %v2124, %v2123
        %v2134 = vpack.c.b16 %v2126, %v2125
        %2143 = vmatprep.subr.bf16.mxu0 0
        %2144 = vmatpush1.bf16.msra.mxu0 %v2134
        %2145 = vmatprep.subr.bf16.mxu0 0
        %2146 = vmatpush1.bf16.msra.mxu0 %v2133
        %2147 = vmatprep.subr.bf16.mxu0 0
        %2148 = vmatpush1.bf16.msra.mxu0 %v2132
        %2149 = vmatprep.subr.bf16.mxu0 0
        %2150 = vmatpush1.bf16.msra.mxu0 %v2131
        %2151 = vmatprep.subr.bf16.mxu0 0
        %2152 = vmatpush1.bf16.msra.mxu0 %v2130
        %2153 = vmatprep.subr.bf16.mxu0 0
        %2154 = vmatpush1.bf16.msra.mxu0 %v2129
        %2155 = vmatprep.subr.bf16.mxu0 0
        %2156 = vmatpush1.bf16.msra.mxu0 %v2128
        %2157 = vmatprep.subr.bf16.mxu0 0
        %2158 = vmatpush1.bf16.msra.mxu0 %v2127
        %2159 = vmatprep.subr.bf16.mxu0 0
        %2160 = vmatpush2.bf16.msra.mxu0 0
        %2161 = vmatprep.subr.bf16.mxu0 0
        %2162 = vmatpush2.bf16.msra.mxu0 0
        %2163 = vmatprep.subr.bf16.mxu0 0
        %2164 = vmatpush2.bf16.msra.mxu0 0
        %2165 = vmatprep.subr.bf16.mxu0 0
        %2166 = vmatpush2.bf16.msra.mxu0 0
        %2167 = vmatprep.subr.bf16.mxu0 0
        %2168 = vmatpush2.bf16.msra.mxu0 0
        %2169 = vmatprep.subr.bf16.mxu0 0
        %2170 = vmatpush2.bf16.msra.mxu0 0
        %2171 = vmatprep.subr.bf16.mxu0 0
        %2172 = vmatpush2.bf16.msra.mxu0 0
        %2173 = vmatprep.subr.bf16.mxu0 0
        %2174 = vmatpush2.bf16.msra.mxu0 0
        %2175 = vmatprep.mubr.bf16.mxu0 0
        %2176 = vmatmul.mubr.bf16.gmra.mxu0 %v2078
        %v2177 = vpop.f32.mrf.mxu0
        %v2178 = vadd.f32 %v1590, %v2177
        %v2179 = vpop.f32.mrf.mxu0
        %v2180 = vpop.f32.mrf.mxu0
        %v2181 = vpop.f32.mrf.mxu0
        %2182 = vdwg.mxu0
        %v2183 = vadd.f32 %v1331, %v2178
        %v2184 = vld [vmem:[%s11 + $0x7] ss:$0 sm:$0xff]
        %v2185 = vld [vmem:[%s11 + $0x18] ss:$0 sm:$0xff]
        %2186 = vadd.xlane.f32.xlu0 %v2183
        %v2187 = vpop.xlane.xlu0 %2186
        %v2188 = vmul.f32 %v2187, %v1320
        %v2189 = vsub.f32 %v2183, %v2188
        %v2190 = vmul.f32 %v2189, %v2189
        %2191 = vadd.xlane.f32.xlu0 %v2190
        %v2192 = vpop.xlane.xlu0 %2191
        %v2193 = vmul.f32 %v2192, %v1320
        %v2194 = vadd.f32 %v2193, 1e-05
        %v2195 = vrsqrt.pop %v2194
        %v2196 = vmul.f32 %v2189, %v2195
        %v2197 = vmul.f32 %v2196, %v2184
        %v2198 = vadd.f32 %v2197, %v2185
        %v2199 = vpack.c.bf16 %v2198, %v2198
        %v2200 = vld [vmem:[%s9] sm:$0xff]
        %v2201 = vld [vmem:[%s9 + $0x8] sm:$0xff]
        %v2202 = vld [vmem:[%s9 + $0x10] sm:$0xff]
        %v2203 = vld [vmem:[%s9 + $0x18] sm:$0xff]
        %v2204 = vld [vmem:[%s9 + $0x20] sm:$0xff]
        %v2205 = vld [vmem:[%s9 + $0x28] sm:$0xff]
        %v2206 = vld [vmem:[%s9 + $0x30] sm:$0xff]
        %v2207 = vld [vmem:[%s9 + $0x38] sm:$0xff]
        %v2208 = vld [vmem:[%s9 + $0x40] sm:$0xff]
        %v2209 = vld [vmem:[%s9 + $0x48] sm:$0xff]
        %v2210 = vld [vmem:[%s9 + $0x50] sm:$0xff]
        %v2211 = vld [vmem:[%s9 + $0x58] sm:$0xff]
        %v2212 = vld [vmem:[%s9 + $0x60] sm:$0xff]
        %v2213 = vld [vmem:[%s9 + $0x68] sm:$0xff]
        %v2214 = vld [vmem:[%s9 + $0x70] sm:$0xff]
        %v2215 = vld [vmem:[%s9 + $0x78] sm:$0xff]
        %s2216 = scalar_lea.vmem %s11, 25
        %v2217 = vld [vmem:[%s2216] ss:$8 sm:$0x3]
        %v2219 = vlaneseq
        %v2220 = vshrl.u32 %v2219, 7
        %v2221 = vsub.s32 0, %v2220
        %v2222 = vrot.slane %v2217, %v2221
        %v2223 = vlaneseq
        %v2224 = vshrl.u32 %v2223, 7
        %v2225 = vsub.s32 1, %v2224
        %v2226 = vrot.slane %v2217, %v2225
        %v2245 = vunpack.c.l.b16 %v2200
        %v2246 = vunpack.c.h.b16 %v2200
        %v2247 = vunpack.c.l.b16 %v2201
        %v2248 = vunpack.c.h.b16 %v2201
        %v2249 = vunpack.c.l.b16 %v2202
        %v2250 = vunpack.c.h.b16 %v2202
        %v2251 = vunpack.c.l.b16 %v2203
        %v2252 = vunpack.c.h.b16 %v2203
        %v2253 = vunpack.c.l.b16 %v2204
        %v2254 = vunpack.c.h.b16 %v2204
        %v2255 = vunpack.c.l.b16 %v2205
        %v2256 = vunpack.c.h.b16 %v2205
        %v2257 = vunpack.c.l.b16 %v2206
        %v2258 = vunpack.c.h.b16 %v2206
        %v2259 = vunpack.c.l.b16 %v2207
        %v2260 = vunpack.c.h.b16 %v2207
        %v2261 = vunpack.c.l.b16 %v2208
        %v2262 = vunpack.c.h.b16 %v2208
        %v2263 = vunpack.c.l.b16 %v2209
        %v2264 = vunpack.c.h.b16 %v2209
        %v2265 = vunpack.c.l.b16 %v2210
        %v2266 = vunpack.c.h.b16 %v2210
        %v2267 = vunpack.c.l.b16 %v2211
        %v2268 = vunpack.c.h.b16 %v2211
        %v2269 = vunpack.c.l.b16 %v2212
        %v2270 = vunpack.c.h.b16 %v2212
        %v2271 = vunpack.c.l.b16 %v2213
        %v2272 = vunpack.c.h.b16 %v2213
        %v2273 = vunpack.c.l.b16 %v2214
        %v2274 = vunpack.c.h.b16 %v2214
        %v2275 = vunpack.c.l.b16 %v2215
        %v2276 = vunpack.c.h.b16 %v2215
        %v2277 = vpack.c.b16 %v2247, %v2245
        %v2278 = vpack.c.b16 %v2248, %v2246
        %v2279 = vpack.c.b16 %v2251, %v2249
        %v2280 = vpack.c.b16 %v2252, %v2250
        %v2281 = vpack.c.b16 %v2255, %v2253
        %v2282 = vpack.c.b16 %v2256, %v2254
        %v2283 = vpack.c.b16 %v2259, %v2257
        %v2284 = vpack.c.b16 %v2260, %v2258
        %v2285 = vpack.c.b16 %v2263, %v2261
        %v2286 = vpack.c.b16 %v2264, %v2262
        %v2287 = vpack.c.b16 %v2267, %v2265
        %v2288 = vpack.c.b16 %v2268, %v2266
        %v2289 = vpack.c.b16 %v2271, %v2269
        %v2290 = vpack.c.b16 %v2272, %v2270
        %v2291 = vpack.c.b16 %v2275, %v2273
        %v2292 = vpack.c.b16 %v2276, %v2274
        %2309 = vmatprep.subr.bf16.mxu0 %v2292
        %2310 = vmatpush1.bf16.msra.mxu0 %v2291
        %2311 = vmatprep.subr.bf16.mxu0 %v2290
        %2312 = vmatpush1.bf16.msra.mxu0 %v2289
        %2313 = vmatprep.subr.bf16.mxu0 %v2288
        %2314 = vmatpush1.bf16.msra.mxu0 %v2287
        %2315 = vmatprep.subr.bf16.mxu0 %v2286
        %2316 = vmatpush1.bf16.msra.mxu0 %v2285
        %2317 = vmatprep.subr.bf16.mxu0 %v2284
        %2318 = vmatpush1.bf16.msra.mxu0 %v2283
        %2319 = vmatprep.subr.bf16.mxu0 %v2282
        %2320 = vmatpush1.bf16.msra.mxu0 %v2281
        %2321 = vmatprep.subr.bf16.mxu0 %v2280
        %2322 = vmatpush1.bf16.msra.mxu0 %v2279
        %2323 = vmatprep.subr.bf16.mxu0 %v2278
        %2324 = vmatpush1.bf16.msra.mxu0 %v2277
        %2325 = vmatprep.subr.bf16.mxu0 0
        %2326 = vmatpush2.bf16.msra.mxu0 0
        %2327 = vmatprep.subr.bf16.mxu0 0
        %2328 = vmatpush2.bf16.msra.mxu0 0
        %2329 = vmatprep.subr.bf16.mxu0 0
        %2330 = vmatpush2.bf16.msra.mxu0 0
        %2331 = vmatprep.subr.bf16.mxu0 0
        %2332 = vmatpush2.bf16.msra.mxu0 0
        %2333 = vmatprep.subr.bf16.mxu0 0
        %2334 = vmatpush2.bf16.msra.mxu0 0
        %2335 = vmatprep.subr.bf16.mxu0 0
        %2336 = vmatpush2.bf16.msra.mxu0 0
        %2337 = vmatprep.subr.bf16.mxu0 0
        %2338 = vmatpush2.bf16.msra.mxu0 0
        %2339 = vmatprep.subr.bf16.mxu0 0
        %2340 = vmatpush2.bf16.msra.mxu0 0
        %2341 = vmatprep.mubr.bf16.mxu0 0
        %2342 = vmatmul.mubr.bf16.gmra.mxu0 %v2199
        %v2343 = vpop.f32.mrf.mxu0
        %v2344 = vadd.f32 %v2222, %v2343
        %v2345 = vpop.f32.mrf.mxu0
        %v2346 = vadd.f32 %v2226, %v2345
        %v2347 = vpop.f32.mrf.mxu0
        %v2348 = vpop.f32.mrf.mxu0
        %2349 = vdwg.mxu0
        %v2350 = vmax.f32 %v2344, 0.0
        %v2351 = vmax.f32 %v2346, 0.0
        %v2352 = vpack.c.bf16 %v2350, %v2350
        %v2353 = vpack.c.bf16 %v2351, %v2351
        %v2354 = vld [vmem:[%s10] sm:$0xf]
        %v2355 = vld [vmem:[%s10 + $0x4] sm:$0xf]
        %v2356 = vld [vmem:[%s10 + $0x8] sm:$0xf]
        %v2357 = vld [vmem:[%s10 + $0xc] sm:$0xf]
        %v2358 = vld [vmem:[%s10 + $0x10] sm:$0xf]
        %v2359 = vld [vmem:[%s10 + $0x14] sm:$0xf]
        %v2360 = vld [vmem:[%s10 + $0x18] sm:$0xf]
        %v2361 = vld [vmem:[%s10 + $0x1c] sm:$0xf]
        %v2362 = vld [vmem:[%s10 + $0x20] sm:$0xf]
        %v2363 = vld [vmem:[%s10 + $0x24] sm:$0xf]
        %v2364 = vld [vmem:[%s10 + $0x28] sm:$0xf]
        %v2365 = vld [vmem:[%s10 + $0x2c] sm:$0xf]
        %v2366 = vld [vmem:[%s10 + $0x30] sm:$0xf]
        %v2367 = vld [vmem:[%s10 + $0x34] sm:$0xf]
        %v2368 = vld [vmem:[%s10 + $0x38] sm:$0xf]
        %v2369 = vld [vmem:[%s10 + $0x3c] sm:$0xf]
        %v2370 = vld [vmem:[%s10 + $0x40] sm:$0xf]
        %v2371 = vld [vmem:[%s10 + $0x44] sm:$0xf]
        %v2372 = vld [vmem:[%s10 + $0x48] sm:$0xf]
        %v2373 = vld [vmem:[%s10 + $0x4c] sm:$0xf]
        %v2374 = vld [vmem:[%s10 + $0x50] sm:$0xf]
        %v2375 = vld [vmem:[%s10 + $0x54] sm:$0xf]
        %v2376 = vld [vmem:[%s10 + $0x58] sm:$0xf]
        %v2377 = vld [vmem:[%s10 + $0x5c] sm:$0xf]
        %v2378 = vld [vmem:[%s10 + $0x60] sm:$0xf]
        %v2379 = vld [vmem:[%s10 + $0x64] sm:$0xf]
        %v2380 = vld [vmem:[%s10 + $0x68] sm:$0xf]
        %v2381 = vld [vmem:[%s10 + $0x6c] sm:$0xf]
        %v2382 = vld [vmem:[%s10 + $0x70] sm:$0xf]
        %v2383 = vld [vmem:[%s10 + $0x74] sm:$0xf]
        %v2384 = vld [vmem:[%s10 + $0x78] sm:$0xf]
        %v2385 = vld [vmem:[%s10 + $0x7c] sm:$0xf]
        %v2386 = vld [vmem:[%s11 + $0x1a] ss:$0 sm:$0xff]
        %v2419 = vunpack.c.l.b16 %v2354
        %v2420 = vunpack.c.l.b16 %v2355
        %v2421 = vunpack.c.l.b16 %v2356
        %v2422 = vunpack.c.l.b16 %v2357
        %v2423 = vunpack.c.l.b16 %v2358
        %v2424 = vunpack.c.l.b16 %v2359
        %v2425 = vunpack.c.l.b16 %v2360
        %v2426 = vunpack.c.l.b16 %v2361
        %v2427 = vunpack.c.l.b16 %v2362
        %v2428 = vunpack.c.l.b16 %v2363
        %v2429 = vunpack.c.l.b16 %v2364
        %v2430 = vunpack.c.l.b16 %v2365
        %v2431 = vunpack.c.l.b16 %v2366
        %v2432 = vunpack.c.l.b16 %v2367
        %v2433 = vunpack.c.l.b16 %v2368
        %v2434 = vunpack.c.l.b16 %v2369
        %v2435 = vunpack.c.l.b16 %v2370
        %v2436 = vunpack.c.l.b16 %v2371
        %v2437 = vunpack.c.l.b16 %v2372
        %v2438 = vunpack.c.l.b16 %v2373
        %v2439 = vunpack.c.l.b16 %v2374
        %v2440 = vunpack.c.l.b16 %v2375
        %v2441 = vunpack.c.l.b16 %v2376
        %v2442 = vunpack.c.l.b16 %v2377
        %v2443 = vunpack.c.l.b16 %v2378
        %v2444 = vunpack.c.l.b16 %v2379
        %v2445 = vunpack.c.l.b16 %v2380
        %v2446 = vunpack.c.l.b16 %v2381
        %v2447 = vunpack.c.l.b16 %v2382
        %v2448 = vunpack.c.l.b16 %v2383
        %v2449 = vunpack.c.l.b16 %v2384
        %v2450 = vunpack.c.l.b16 %v2385
        %v2451 = vpack.c.b16 %v2420, %v2419
        %v2452 = vpack.c.b16 %v2422, %v2421
        %v2453 = vpack.c.b16 %v2424, %v2423
        %v2454 = vpack.c.b16 %v2426, %v2425
        %v2455 = vpack.c.b16 %v2428, %v2427
        %v2456 = vpack.c.b16 %v2430, %v2429
        %v2457 = vpack.c.b16 %v2432, %v2431
        %v2458 = vpack.c.b16 %v2434, %v2433
        %v2459 = vpack.c.b16 %v2436, %v2435
        %v2460 = vpack.c.b16 %v2438, %v2437
        %v2461 = vpack.c.b16 %v2440, %v2439
        %v2462 = vpack.c.b16 %v2442, %v2441
        %v2463 = vpack.c.b16 %v2444, %v2443
        %v2464 = vpack.c.b16 %v2446, %v2445
        %v2465 = vpack.c.b16 %v2448, %v2447
        %v2466 = vpack.c.b16 %v2450, %v2449
        %2483 = vmatprep.subr.bf16.mxu0 0
        %2484 = vmatpush1.bf16.msra.mxu0 %v2458
        %2485 = vmatprep.subr.bf16.mxu0 0
        %2486 = vmatpush1.bf16.msra.mxu0 %v2457
        %2487 = vmatprep.subr.bf16.mxu0 0
        %2488 = vmatpush1.bf16.msra.mxu0 %v2456
        %2489 = vmatprep.subr.bf16.mxu0 0
        %2490 = vmatpush1.bf16.msra.mxu0 %v2455
        %2491 = vmatprep.subr.bf16.mxu0 0
        %2492 = vmatpush1.bf16.msra.mxu0 %v2454
        %2493 = vmatprep.subr.bf16.mxu0 0
        %2494 = vmatpush1.bf16.msra.mxu0 %v2453
        %2495 = vmatprep.subr.bf16.mxu0 0
        %2496 = vmatpush1.bf16.msra.mxu0 %v2452
        %2497 = vmatprep.subr.bf16.mxu0 0
        %2498 = vmatpush1.bf16.msra.mxu0 %v2451
        %2499 = vmatprep.subr.bf16.mxu0 0
        %2500 = vmatpush2.bf16.msra.mxu0 %v2466
        %2501 = vmatprep.subr.bf16.mxu0 0
        %2502 = vmatpush2.bf16.msra.mxu0 %v2465
        %2503 = vmatprep.subr.bf16.mxu0 0
        %2504 = vmatpush2.bf16.msra.mxu0 %v2464
        %2505 = vmatprep.subr.bf16.mxu0 0
        %2506 = vmatpush2.bf16.msra.mxu0 %v2463
        %2507 = vmatprep.subr.bf16.mxu0 0
        %2508 = vmatpush2.bf16.msra.mxu0 %v2462
        %2509 = vmatprep.subr.bf16.mxu0 0
        %2510 = vmatpush2.bf16.msra.mxu0 %v2461
        %2511 = vmatprep.subr.bf16.mxu0 0
        %2512 = vmatpush2.bf16.msra.mxu0 %v2460
        %2513 = vmatprep.subr.bf16.mxu0 0
        %2514 = vmatpush2.bf16.msra.mxu0 %v2459
        %2515 = vmatprep.mubr.bf16.mxu0 %v2353
        %2516 = vmatmul.mubr.bf16.gmra.mxu0 %v2352
        %v2517 = vpop.f32.mrf.mxu0
        %v2518 = vadd.f32 %v2386, %v2517
        %v2519 = vpop.f32.mrf.mxu0
        %v2520 = vpop.f32.mrf.mxu0
        %v2521 = vpop.f32.mrf.mxu0
        %2522 = vdwg.mxu0
        %v2523 = vadd.f32 %v2198, %v2518
        %v2524 = vld [vmem:[%s11 + $0x1b] ss:$0 sm:$0xff]
        %v2525 = vld [vmem:[%s11 + $0x1c] ss:$0 sm:$0xff]
        %2526 = vadd.xlane.f32.xlu0 %v2523
        %v2527 = vpop.xlane.xlu0 %2526
        %v2528 = vmul.f32 %v2527, %v1320
        %v2529 = vsub.f32 %v2523, %v2528
        %v2530 = vmul.f32 %v2529, %v2529
        %2531 = vadd.xlane.f32.xlu0 %v2530
        %v2532 = vpop.xlane.xlu0 %2531
        %v2533 = vmul.f32 %v2532, %v1320
        %v2534 = vadd.f32 %v2533, 1e-05
        %v2535 = vrsqrt.pop %v2534
        %v2536 = vmul.f32 %v2529, %v2535
        %v2537 = vmul.f32 %v2536, %v2524
        %v2538 = vadd.f32 %v2537, %v2525
        %2539 = vst [vmem:[%s439] sm:$0xff] %v2538
        %s2540 = sand.u32 %s306, 1
        %s2541 = scalar_lea.sflag [#allocation3], %s2540
        %s2542 = sand.u32 %s306, 1
        %s2543 = smul.addr %s2542, 8
        %s2544 = scalar_lea.vmem [#allocation2], %s2543
        // Predicated region
        $region69: #{decoder_layer_forward.1} parent=67 // pred_check
          %p2545 = pneg %p316
        $region70: #{decoder_layer_forward.1} parent=67 // pred_check_branch
          %2547 = sbr.rel (%p2545) target = $region72
        $region71: #{decoder_layer_forward.1} parent=67 // pred_region
          %s2549 = ssub.s32 128, 128
          %2550 = vsyncadd %s2541, %s2549
          %s2551 = smul.addr %s26, 128
          %s2552 = scalar_lea.hbm %s12, %s2551
          %s2554 = sshll.u32 %s2544, 4
          %s2555 = int_to_ptr.vmem [resolvable:$true] %s2554
          %2557 = dma.vmem_to_hbm [thread:$0]  %s2555, 128, %s2552, %s2541
        $region72: #{decoder_layer_forward.1} parent=67 // pred_fallthru
          _
      $region68: #{decoder_layer_forward.1} parent=5 // pred_fallthru
        _
      %p2558 = scmp.le.s32.totalorder 2, %s21
      // Predicated region
      $region73: #{decoder_layer_forward.1} parent=5 // pred_check
        %p2559 = pneg %p2558
      $region74: #{decoder_layer_forward.1} parent=5 // pred_check_branch
        %2561 = sbr.rel (%p2559) target = $region76
      $region75: #{decoder_layer_forward.1} parent=5 // pred_region
        %s2562 = ssub.s32 %s21, 2
        // Predicated region
        $region77: #{decoder_layer_forward.1} parent=75 // pred_check
          %p2563 = pneg %p322
        $region78: #{decoder_layer_forward.1} parent=75 // pred_check_branch
          %2565 = sbr.rel (%p2563) target = $region80
        $region79: #{decoder_layer_forward.1} parent=75 // pred_region
          %s2566 = sand.u32 %s307, 1
          %s2567 = scalar_lea.sflag [#allocation3], %s2566
          %s2568 = sand.u32 %s307, 1
          %s2569 = smul.addr %s2568, 8
          %s2570 = scalar_lea.vmem [#allocation2], %s2569
          %2571 = dma.done %s2567, 128
        $region80: #{decoder_layer_forward.1} parent=75 // pred_fallthru
          _
      $region76: #{decoder_layer_forward.1} parent=5 // pred_fallthru
        _
    $region6: #{decoder_layer_forward.1} parent=1 // loop_footer
      %s25 = sadd.s32 1, %s21
    $region7: #{decoder_layer_forward.1} parent=1 // loop_footer_branch
      %20 = sbr.rel target = $region3
    $region8: #{decoder_layer_forward.1} parent=1 // loop_exit
      _
    %2572 = vsyncpa [#allocation3], 1
    %s2573 = scalar_lea.sflag [#allocation3], 1
    %2574 = vsyncpa %s2573, 1

</llo_original>
